<compile_context>
chip_gen: v5e
topology: v5e:2x2
jax: 0.10.0
libtpu: 0.0.40
codegen_flags: <defaults>
</compile_context>

<pallas_src>
import functools

import jax
import jax.numpy as jnp
from jax.scipy.special import logsumexp as _jsp_logsumexp
from jax.experimental import pallas as pl
from jax.experimental.pallas import tpu as pltpu


def _logaddexp(x, y):
    # Stable logaddexp for finite inputs (uses jnp.log, not log1p, to stay on
    # the safest Mosaic transcendental set).  Not +/-inf safe.
    m = jnp.maximum(x, y)
    return m + jnp.log(1.0 + jnp.exp(-jnp.abs(x - y)))


def _tree_kernel(q_ref, key_ref, value_ref, sup_ref, val_ref, *, depth, D):
    q = q_ref[...]                       # (tb, D)        f32
    key2d = key_ref[...]                 # (H, k_num, 2D) f32  (k1 | k2)
    vals = value_ref[...]                # (H, v_num, V)  f32
    tb = q.shape[0]
    H = key2d.shape[0]
    v_num, V = vals.shape[1], vals.shape[2]

    qp = q[None, :, :]                   # (1, tb, D) broadcast over heads (hoisted)
    qn = -qp

    ix = jnp.zeros((H, tb, 1), jnp.int32)       # within-level node index
    sup_acc = None
    for d in range(depth):                      # depth is small & static
        base = 2 ** d - 1
        # --- gather this level's key rows along the visited path ---
        # exact VPU select over the 2^d candidates of level d (MXU-free; the
        # VPU is idle because the match below is EUP-bound).
        kd = jnp.zeros((H, tb, 2 * D), jnp.float32)
        for m in range(2 ** d):
            cand = key2d[:, base + m:base + m + 1, :]          # (H, 1, 2D)
            kd = jnp.where(ix == m, cand, kd)                  # (H, tb, 2D)
        k1 = kd[:, :, :D]
        k2 = kd[:, :, D:]

        # --- match(query, key): or_(and_(k1, q), and_(k2, -q)); -logsumexp(-., -1)
        a = -_logaddexp(-k1, qn)                               # and_(k1,  q)
        b = -_logaddexp(-k2, qp)                               # and_(k2, -q)
        s = _logaddexp(a, b)                                   # or_
        neg_s = -s
        mx = jnp.max(neg_s, axis=-1, keepdims=True)
        sup_d = -(mx + jnp.log(jnp.sum(jnp.exp(neg_s - mx),
                                       axis=-1, keepdims=True)))  # (H, tb, 1)

        # --- deterministic branch (random=False) ---
        bit = sup_d >= 0.0
        bitf = bit.astype(jnp.float32)
        ix = 2 * ix + bit.astype(jnp.int32)
        sup_signed = (2.0 * bitf - 1.0) * sup_d
        if sup_acc is None:
            sup_acc = sup_signed
        else:                                                  # and_(support, _support)
            sup_acc = -_logaddexp(-sup_acc, -sup_signed)

    # --- combine heads: support = -logsumexp_h(-support_h) ---
    neg = -sup_acc                                             # (H, tb, 1)
    acc = neg[0]
    for h in range(1, H):
        acc = _logaddexp(acc, neg[h])
    sup_ref[...] = -acc                                        # (tb, 1)

    # --- leaf value gather (exact VPU select), stored lane-dense as (tb, H*V) ---
    vout = jnp.zeros((H, tb, V), jnp.float32)
    for m in range(v_num):
        cand = vals[:, m:m + 1, :]                             # (H, 1, V)
        vout = jnp.where(ix == m, cand, vout)                  # (H, tb, V)
    for h in range(H):
        val_ref[:, h * V:(h + 1) * V] = vout[h]


def tree_layer_forward(query, key, value, depth):
    """query (B, D); key (H, 2^depth-1, 2, D); value (H, 2^depth, V)."""
    B, D = query.shape
    H, k_num = key.shape[0], key.shape[1]
    v_num, V = value.shape[1], value.shape[2]
    assert k_num == 2 ** depth - 1 and v_num == 2 ** depth

    key2d = key.reshape(H, k_num, 2 * D)        # contiguous -> free (no HBM copy)

    # Batch tile: whole B when small; otherwise tile B (parallel axis -> megacore).
    tb = B if B <= 512 else 512
    assert B % tb == 0, "B must be a multiple of the batch tile"
    grid = (B // tb,)

    kernel = functools.partial(_tree_kernel, depth=depth, D=D)
    sup, val = pl.pallas_call(
        kernel,
        out_shape=(jax.ShapeDtypeStruct((B, 1), jnp.float32),
                   jax.ShapeDtypeStruct((B, H * V), jnp.float32)),
        grid_spec=pltpu.PrefetchScalarGridSpec(
            num_scalar_prefetch=0,
            grid=grid,
            in_specs=[
                pl.BlockSpec((tb, D), lambda i: (i, 0)),
                pl.BlockSpec((H, k_num, 2 * D), lambda i: (0, 0, 0)),
                pl.BlockSpec((H, v_num, V), lambda i: (0, 0, 0)),
            ],
            out_specs=[
                pl.BlockSpec((tb, 1), lambda i: (i, 0)),
                pl.BlockSpec((tb, H * V), lambda i: (i, 0)),
            ],
        ),
        compiler_params=pltpu.CompilerParams(dimension_semantics=("parallel",)),
    )(query, key2d, value)

    return sup.reshape(B), val.reshape(B, H, V)


def _ref_forward(query, key, value, depth):
    """Pure-JAX mirror of TreeLayer.forward(random=False) (torch semantics)."""
    B, D = query.shape
    H, k_num = key.shape[0], key.shape[1]
    v_num, V = value.shape[1], value.shape[2]
    q = jnp.broadcast_to(query[:, None, :], (B, H, D)).reshape(-1, D)
    hid = jnp.broadcast_to(jnp.arange(H)[None, :], (B, H)).reshape(-1)
    keyf = key.reshape(-1, 2, D)
    valf = value.reshape(-1, V)
    ix = jnp.zeros((B * H,), jnp.int32)
    support = None
    for d in range(depth):
        node = (2 ** d - 1) + ix
        k = keyf[hid * k_num + node]                 # (B*H, 2, D)
        k1, k2 = k[:, 0, :], k[:, 1, :]
        a = -jnp.logaddexp(-k1, -q)
        b = -jnp.logaddexp(-k2, q)
        s = jnp.logaddexp(a, b)
        sup = -_jsp_logsumexp(-s, axis=-1)
        bit = sup >= 0.0
        ix = 2 * ix + bit.astype(jnp.int32)
        sup = (2.0 * bit.astype(jnp.float32) - 1.0) * sup
        support = sup if support is None else -jnp.logaddexp(-support, -sup)
    val = valf[hid * v_num + ix].reshape(B, H, V)
    support = -_jsp_logsumexp(-support.reshape(B, H), axis=-1)   # -logsumexp_h(-s_h)
    return support, val


if __name__ == "__main__":
    B, H, depth, q_dim, v_dim, bias = 8, 4, 3, 32, 16, 5.0
    k_num = 2 ** depth - 1
    v_num = 2 ** depth

    root = jax.random.PRNGKey(0)
    kq, kk, kv = jax.random.split(root, 3)
    query = jax.random.normal(kq, (B, q_dim), dtype=jnp.float32)
    key_param = bias + jax.random.normal(kk, (H, k_num, 2, q_dim), dtype=jnp.float32)
    value_param = jax.random.normal(kv, (H, v_num, v_dim), dtype=jnp.float32)

    sup, val = tree_layer_forward(query, key_param, value_param, depth)
    sup = jax.block_until_ready(sup)
    val = jax.block_until_ready(val)

    sup_ref, val_ref = _ref_forward(query, key_param, value_param, depth)

    assert sup.shape == (B,) and val.shape == (B, H, v_dim)
    assert jnp.allclose(sup, sup_ref, atol=1e-4, rtol=1e-4), (sup, sup_ref)
    assert jnp.allclose(val, val_ref, atol=1e-4, rtol=1e-4)
    print("KERNEL_OK")
</pallas_src>

<mosaic_0001>
module attributes {stable_mosaic.version = 11 : i64} {
  func.func @_tree_kernel(%arg0: i32, %arg1: memref<8x32xf32, #tpu.memory_space<vmem>>, %arg2: memref<4x7x64xf32, #tpu.memory_space<vmem>>, %arg3: memref<4x8x16xf32, #tpu.memory_space<vmem>>, %arg4: memref<8x1xf32, #tpu.memory_space<vmem>>, %arg5: memref<8x64xf32, #tpu.memory_space<vmem>>) attributes {dimension_semantics = [#tpu.dimension_semantics<parallel>], iteration_bounds = array<i64: 1>, scalar_prefetch = 0 : i64, scratch_operands = 0 : i64, tpu.core_type = #tpu.core_type<tc>, window_params = [{transform_indices = @transform_0, window_bounds = array<i64: 8, 32>}, {pipeline_mode = #tpu.pipeline_mode<synchronous>, transform_indices = @transform_1, window_bounds = array<i64: 4, 7, 64>}, {pipeline_mode = #tpu.pipeline_mode<synchronous>, transform_indices = @transform_2, window_bounds = array<i64: 4, 8, 16>}, {transform_indices = @transform_3, window_bounds = array<i64: 8, 1>}, {transform_indices = @transform_4, window_bounds = array<i64: 8, 64>}]} {
    %c0 = arith.constant 0 : index
    %c0_0 = arith.constant 0 : index
    %0 = vector.load %arg1[%c0, %c0_0] : memref<8x32xf32, #tpu.memory_space<vmem>>, vector<8x32xf32>
    %c0_1 = arith.constant 0 : index
    %c0_2 = arith.constant 0 : index
    %c0_3 = arith.constant 0 : index
    %1 = vector.load %arg2[%c0_1, %c0_2, %c0_3] : memref<4x7x64xf32, #tpu.memory_space<vmem>>, vector<4x7x64xf32>
    %c0_4 = arith.constant 0 : index
    %c0_5 = arith.constant 0 : index
    %c0_6 = arith.constant 0 : index
    %2 = vector.load %arg3[%c0_4, %c0_5, %c0_6] : memref<4x8x16xf32, #tpu.memory_space<vmem>>, vector<4x8x16xf32>
    %3 = vector.shape_cast %0 : vector<8x32xf32> to vector<1x8x32xf32>
    %cst = arith.constant 0.000000e+00 : f32
    %4 = vector.broadcast %cst : f32 to vector<1x8x32xf32>
    %5 = arith.subf %4, %3 : vector<1x8x32xf32>
    %c0_i32 = arith.constant 0 : i32
    %6 = vector.broadcast %c0_i32 : i32 to vector<4x8x1xi32>
    %cst_7 = arith.constant 0.000000e+00 : f32
    %7 = vector.broadcast %cst_7 : f32 to vector<4x8x64xf32>
    %8 = vector.extract_strided_slice %1 {offsets = [0, 0, 0], sizes = [4, 1, 64], strides = [1, 1, 1]} : vector<4x7x64xf32> to vector<4x1x64xf32>
    %c0_i32_8 = arith.constant 0 : i32
    %9 = vector.broadcast %c0_i32_8 : i32 to vector<4x8x1xi32>
    %10 = arith.cmpi eq, %6, %9 : vector<4x8x1xi32>
    %11 = vector.shape_cast %10 : vector<4x8x1xi1> to vector<4x8x1xi1>
    %12 = vector.broadcast %11 : vector<4x8x1xi1> to vector<4x8x64xi1>
    %13 = vector.shape_cast %8 : vector<4x1x64xf32> to vector<4x1x64xf32>
    %14 = vector.broadcast %13 : vector<4x1x64xf32> to vector<4x8x64xf32>
    %15 = arith.select %12, %14, %7 : vector<4x8x64xi1>, vector<4x8x64xf32>
    %16 = vector.extract_strided_slice %15 {offsets = [0, 0, 0], sizes = [4, 8, 32], strides = [1, 1, 1]} : vector<4x8x64xf32> to vector<4x8x32xf32>
    %17 = vector.extract_strided_slice %15 {offsets = [0, 0, 32], sizes = [4, 8, 32], strides = [1, 1, 1]} : vector<4x8x64xf32> to vector<4x8x32xf32>
    %cst_9 = arith.constant 0.000000e+00 : f32
    %18 = vector.broadcast %cst_9 : f32 to vector<4x8x32xf32>
    %19 = arith.subf %18, %16 : vector<4x8x32xf32>
    %20 = vector.broadcast %5 : vector<1x8x32xf32> to vector<4x8x32xf32>
    %21 = arith.maximumf %19, %20 : vector<4x8x32xf32>
    %22 = vector.broadcast %5 : vector<1x8x32xf32> to vector<4x8x32xf32>
    %23 = arith.subf %19, %22 : vector<4x8x32xf32>
    %24 = math.absf %23 : vector<4x8x32xf32>
    %cst_10 = arith.constant 0.000000e+00 : f32
    %25 = vector.broadcast %cst_10 : f32 to vector<4x8x32xf32>
    %26 = arith.subf %25, %24 : vector<4x8x32xf32>
    %27 = math.exp %26 : vector<4x8x32xf32>
    %cst_11 = arith.constant 1.000000e+00 : f32
    %28 = vector.broadcast %cst_11 : f32 to vector<4x8x32xf32>
    %29 = arith.addf %28, %27 : vector<4x8x32xf32>
    %30 = math.log %29 : vector<4x8x32xf32>
    %31 = arith.addf %21, %30 : vector<4x8x32xf32>
    %cst_12 = arith.constant 0.000000e+00 : f32
    %32 = vector.broadcast %cst_12 : f32 to vector<4x8x32xf32>
    %33 = arith.subf %32, %31 : vector<4x8x32xf32>
    %cst_13 = arith.constant 0.000000e+00 : f32
    %34 = vector.broadcast %cst_13 : f32 to vector<4x8x32xf32>
    %35 = arith.subf %34, %17 : vector<4x8x32xf32>
    %36 = vector.broadcast %3 : vector<1x8x32xf32> to vector<4x8x32xf32>
    %37 = arith.maximumf %35, %36 : vector<4x8x32xf32>
    %38 = vector.broadcast %3 : vector<1x8x32xf32> to vector<4x8x32xf32>
    %39 = arith.subf %35, %38 : vector<4x8x32xf32>
    %40 = math.absf %39 : vector<4x8x32xf32>
    %cst_14 = arith.constant 0.000000e+00 : f32
    %41 = vector.broadcast %cst_14 : f32 to vector<4x8x32xf32>
    %42 = arith.subf %41, %40 : vector<4x8x32xf32>
    %43 = math.exp %42 : vector<4x8x32xf32>
    %cst_15 = arith.constant 1.000000e+00 : f32
    %44 = vector.broadcast %cst_15 : f32 to vector<4x8x32xf32>
    %45 = arith.addf %44, %43 : vector<4x8x32xf32>
    %46 = math.log %45 : vector<4x8x32xf32>
    %47 = arith.addf %37, %46 : vector<4x8x32xf32>
    %cst_16 = arith.constant 0.000000e+00 : f32
    %48 = vector.broadcast %cst_16 : f32 to vector<4x8x32xf32>
    %49 = arith.subf %48, %47 : vector<4x8x32xf32>
    %50 = arith.maximumf %33, %49 : vector<4x8x32xf32>
    %51 = arith.subf %33, %49 : vector<4x8x32xf32>
    %52 = math.absf %51 : vector<4x8x32xf32>
    %cst_17 = arith.constant 0.000000e+00 : f32
    %53 = vector.broadcast %cst_17 : f32 to vector<4x8x32xf32>
    %54 = arith.subf %53, %52 : vector<4x8x32xf32>
    %55 = math.exp %54 : vector<4x8x32xf32>
    %cst_18 = arith.constant 1.000000e+00 : f32
    %56 = vector.broadcast %cst_18 : f32 to vector<4x8x32xf32>
    %57 = arith.addf %56, %55 : vector<4x8x32xf32>
    %58 = math.log %57 : vector<4x8x32xf32>
    %59 = arith.addf %50, %58 : vector<4x8x32xf32>
    %cst_19 = arith.constant 0.000000e+00 : f32
    %60 = vector.broadcast %cst_19 : f32 to vector<4x8x32xf32>
    %61 = arith.subf %60, %59 : vector<4x8x32xf32>
    %cst_20 = arith.constant dense<0xFF800000> : vector<4x8xf32>
    %62 = vector.multi_reduction <maximumf>, %61, %cst_20 [2] : vector<4x8x32xf32> to vector<4x8xf32>
    %63 = vector.shape_cast %62 : vector<4x8xf32> to vector<4x8x1xf32>
    %64 = vector.broadcast %63 : vector<4x8x1xf32> to vector<4x8x32xf32>
    %65 = arith.subf %61, %64 : vector<4x8x32xf32>
    %66 = math.exp %65 : vector<4x8x32xf32>
    %cst_21 = arith.constant dense<0.000000e+00> : vector<4x8xf32>
    %67 = vector.multi_reduction <add>, %66, %cst_21 [2] : vector<4x8x32xf32> to vector<4x8xf32>
    %68 = vector.shape_cast %67 : vector<4x8xf32> to vector<4x8x1xf32>
    %69 = math.log %68 : vector<4x8x1xf32>
    %70 = arith.addf %63, %69 : vector<4x8x1xf32>
    %cst_22 = arith.constant 0.000000e+00 : f32
    %71 = vector.broadcast %cst_22 : f32 to vector<4x8x1xf32>
    %72 = arith.subf %71, %70 : vector<4x8x1xf32>
    %cst_23 = arith.constant 0.000000e+00 : f32
    %73 = vector.broadcast %cst_23 : f32 to vector<4x8x1xf32>
    %74 = arith.cmpf oge, %72, %73 : vector<4x8x1xf32>
    %75 = arith.extui %74 : vector<4x8x1xi1> to vector<4x8x1xi32>
    %76 = arith.sitofp %75 : vector<4x8x1xi32> to vector<4x8x1xf32>
    %c2_i32 = arith.constant 2 : i32
    %77 = vector.broadcast %c2_i32 : i32 to vector<4x8x1xi32>
    %78 = arith.muli %77, %6 : vector<4x8x1xi32>
    %79 = arith.extui %74 : vector<4x8x1xi1> to vector<4x8x1xi32>
    %80 = arith.addi %78, %79 : vector<4x8x1xi32>
    %cst_24 = arith.constant 2.000000e+00 : f32
    %81 = vector.broadcast %cst_24 : f32 to vector<4x8x1xf32>
    %82 = arith.mulf %81, %76 : vector<4x8x1xf32>
    %cst_25 = arith.constant 1.000000e+00 : f32
    %83 = vector.broadcast %cst_25 : f32 to vector<4x8x1xf32>
    %84 = arith.subf %82, %83 : vector<4x8x1xf32>
    %85 = arith.mulf %84, %72 : vector<4x8x1xf32>
    %cst_26 = arith.constant 0.000000e+00 : f32
    %86 = vector.broadcast %cst_26 : f32 to vector<4x8x64xf32>
    %87 = vector.extract_strided_slice %1 {offsets = [0, 1, 0], sizes = [4, 1, 64], strides = [1, 1, 1]} : vector<4x7x64xf32> to vector<4x1x64xf32>
    %c0_i32_27 = arith.constant 0 : i32
    %88 = vector.broadcast %c0_i32_27 : i32 to vector<4x8x1xi32>
    %89 = arith.cmpi eq, %80, %88 : vector<4x8x1xi32>
    %90 = vector.shape_cast %89 : vector<4x8x1xi1> to vector<4x8x1xi1>
    %91 = vector.broadcast %90 : vector<4x8x1xi1> to vector<4x8x64xi1>
    %92 = vector.shape_cast %87 : vector<4x1x64xf32> to vector<4x1x64xf32>
    %93 = vector.broadcast %92 : vector<4x1x64xf32> to vector<4x8x64xf32>
    %94 = arith.select %91, %93, %86 : vector<4x8x64xi1>, vector<4x8x64xf32>
    %95 = vector.extract_strided_slice %1 {offsets = [0, 2, 0], sizes = [4, 1, 64], strides = [1, 1, 1]} : vector<4x7x64xf32> to vector<4x1x64xf32>
    %c1_i32 = arith.constant 1 : i32
    %96 = vector.broadcast %c1_i32 : i32 to vector<4x8x1xi32>
    %97 = arith.cmpi eq, %80, %96 : vector<4x8x1xi32>
    %98 = vector.shape_cast %97 : vector<4x8x1xi1> to vector<4x8x1xi1>
    %99 = vector.broadcast %98 : vector<4x8x1xi1> to vector<4x8x64xi1>
    %100 = vector.shape_cast %95 : vector<4x1x64xf32> to vector<4x1x64xf32>
    %101 = vector.broadcast %100 : vector<4x1x64xf32> to vector<4x8x64xf32>
    %102 = arith.select %99, %101, %94 : vector<4x8x64xi1>, vector<4x8x64xf32>
    %103 = vector.extract_strided_slice %102 {offsets = [0, 0, 0], sizes = [4, 8, 32], strides = [1, 1, 1]} : vector<4x8x64xf32> to vector<4x8x32xf32>
    %104 = vector.extract_strided_slice %102 {offsets = [0, 0, 32], sizes = [4, 8, 32], strides = [1, 1, 1]} : vector<4x8x64xf32> to vector<4x8x32xf32>
    %cst_28 = arith.constant 0.000000e+00 : f32
    %105 = vector.broadcast %cst_28 : f32 to vector<4x8x32xf32>
    %106 = arith.subf %105, %103 : vector<4x8x32xf32>
    %107 = vector.broadcast %5 : vector<1x8x32xf32> to vector<4x8x32xf32>
    %108 = arith.maximumf %106, %107 : vector<4x8x32xf32>
    %109 = vector.broadcast %5 : vector<1x8x32xf32> to vector<4x8x32xf32>
    %110 = arith.subf %106, %109 : vector<4x8x32xf32>
    %111 = math.absf %110 : vector<4x8x32xf32>
    %cst_29 = arith.constant 0.000000e+00 : f32
    %112 = vector.broadcast %cst_29 : f32 to vector<4x8x32xf32>
    %113 = arith.subf %112, %111 : vector<4x8x32xf32>
    %114 = math.exp %113 : vector<4x8x32xf32>
    %cst_30 = arith.constant 1.000000e+00 : f32
    %115 = vector.broadcast %cst_30 : f32 to vector<4x8x32xf32>
    %116 = arith.addf %115, %114 : vector<4x8x32xf32>
    %117 = math.log %116 : vector<4x8x32xf32>
    %118 = arith.addf %108, %117 : vector<4x8x32xf32>
    %cst_31 = arith.constant 0.000000e+00 : f32
    %119 = vector.broadcast %cst_31 : f32 to vector<4x8x32xf32>
    %120 = arith.subf %119, %118 : vector<4x8x32xf32>
    %cst_32 = arith.constant 0.000000e+00 : f32
    %121 = vector.broadcast %cst_32 : f32 to vector<4x8x32xf32>
    %122 = arith.subf %121, %104 : vector<4x8x32xf32>
    %123 = vector.broadcast %3 : vector<1x8x32xf32> to vector<4x8x32xf32>
    %124 = arith.maximumf %122, %123 : vector<4x8x32xf32>
    %125 = vector.broadcast %3 : vector<1x8x32xf32> to vector<4x8x32xf32>
    %126 = arith.subf %122, %125 : vector<4x8x32xf32>
    %127 = math.absf %126 : vector<4x8x32xf32>
    %cst_33 = arith.constant 0.000000e+00 : f32
    %128 = vector.broadcast %cst_33 : f32 to vector<4x8x32xf32>
    %129 = arith.subf %128, %127 : vector<4x8x32xf32>
    %130 = math.exp %129 : vector<4x8x32xf32>
    %cst_34 = arith.constant 1.000000e+00 : f32
    %131 = vector.broadcast %cst_34 : f32 to vector<4x8x32xf32>
    %132 = arith.addf %131, %130 : vector<4x8x32xf32>
    %133 = math.log %132 : vector<4x8x32xf32>
    %134 = arith.addf %124, %133 : vector<4x8x32xf32>
    %cst_35 = arith.constant 0.000000e+00 : f32
    %135 = vector.broadcast %cst_35 : f32 to vector<4x8x32xf32>
    %136 = arith.subf %135, %134 : vector<4x8x32xf32>
    %137 = arith.maximumf %120, %136 : vector<4x8x32xf32>
    %138 = arith.subf %120, %136 : vector<4x8x32xf32>
    %139 = math.absf %138 : vector<4x8x32xf32>
    %cst_36 = arith.constant 0.000000e+00 : f32
    %140 = vector.broadcast %cst_36 : f32 to vector<4x8x32xf32>
    %141 = arith.subf %140, %139 : vector<4x8x32xf32>
    %142 = math.exp %141 : vector<4x8x32xf32>
    %cst_37 = arith.constant 1.000000e+00 : f32
    %143 = vector.broadcast %cst_37 : f32 to vector<4x8x32xf32>
    %144 = arith.addf %143, %142 : vector<4x8x32xf32>
    %145 = math.log %144 : vector<4x8x32xf32>
    %146 = arith.addf %137, %145 : vector<4x8x32xf32>
    %cst_38 = arith.constant 0.000000e+00 : f32
    %147 = vector.broadcast %cst_38 : f32 to vector<4x8x32xf32>
    %148 = arith.subf %147, %146 : vector<4x8x32xf32>
    %cst_39 = arith.constant dense<0xFF800000> : vector<4x8xf32>
    %149 = vector.multi_reduction <maximumf>, %148, %cst_39 [2] : vector<4x8x32xf32> to vector<4x8xf32>
    %150 = vector.shape_cast %149 : vector<4x8xf32> to vector<4x8x1xf32>
    %151 = vector.broadcast %150 : vector<4x8x1xf32> to vector<4x8x32xf32>
    %152 = arith.subf %148, %151 : vector<4x8x32xf32>
    %153 = math.exp %152 : vector<4x8x32xf32>
    %cst_40 = arith.constant dense<0.000000e+00> : vector<4x8xf32>
    %154 = vector.multi_reduction <add>, %153, %cst_40 [2] : vector<4x8x32xf32> to vector<4x8xf32>
    %155 = vector.shape_cast %154 : vector<4x8xf32> to vector<4x8x1xf32>
    %156 = math.log %155 : vector<4x8x1xf32>
    %157 = arith.addf %150, %156 : vector<4x8x1xf32>
    %cst_41 = arith.constant 0.000000e+00 : f32
    %158 = vector.broadcast %cst_41 : f32 to vector<4x8x1xf32>
    %159 = arith.subf %158, %157 : vector<4x8x1xf32>
    %cst_42 = arith.constant 0.000000e+00 : f32
    %160 = vector.broadcast %cst_42 : f32 to vector<4x8x1xf32>
    %161 = arith.cmpf oge, %159, %160 : vector<4x8x1xf32>
    %162 = arith.extui %161 : vector<4x8x1xi1> to vector<4x8x1xi32>
    %163 = arith.sitofp %162 : vector<4x8x1xi32> to vector<4x8x1xf32>
    %c2_i32_43 = arith.constant 2 : i32
    %164 = vector.broadcast %c2_i32_43 : i32 to vector<4x8x1xi32>
    %165 = arith.muli %164, %80 : vector<4x8x1xi32>
    %166 = arith.extui %161 : vector<4x8x1xi1> to vector<4x8x1xi32>
    %167 = arith.addi %165, %166 : vector<4x8x1xi32>
    %cst_44 = arith.constant 2.000000e+00 : f32
    %168 = vector.broadcast %cst_44 : f32 to vector<4x8x1xf32>
    %169 = arith.mulf %168, %163 : vector<4x8x1xf32>
    %cst_45 = arith.constant 1.000000e+00 : f32
    %170 = vector.broadcast %cst_45 : f32 to vector<4x8x1xf32>
    %171 = arith.subf %169, %170 : vector<4x8x1xf32>
    %172 = arith.mulf %171, %159 : vector<4x8x1xf32>
    %cst_46 = arith.constant 0.000000e+00 : f32
    %173 = vector.broadcast %cst_46 : f32 to vector<4x8x1xf32>
    %174 = arith.subf %173, %85 : vector<4x8x1xf32>
    %cst_47 = arith.constant 0.000000e+00 : f32
    %175 = vector.broadcast %cst_47 : f32 to vector<4x8x1xf32>
    %176 = arith.subf %175, %172 : vector<4x8x1xf32>
    %177 = arith.maximumf %174, %176 : vector<4x8x1xf32>
    %178 = arith.subf %174, %176 : vector<4x8x1xf32>
    %179 = math.absf %178 : vector<4x8x1xf32>
    %cst_48 = arith.constant 0.000000e+00 : f32
    %180 = vector.broadcast %cst_48 : f32 to vector<4x8x1xf32>
    %181 = arith.subf %180, %179 : vector<4x8x1xf32>
    %182 = math.exp %181 : vector<4x8x1xf32>
    %cst_49 = arith.constant 1.000000e+00 : f32
    %183 = vector.broadcast %cst_49 : f32 to vector<4x8x1xf32>
    %184 = arith.addf %183, %182 : vector<4x8x1xf32>
    %185 = math.log %184 : vector<4x8x1xf32>
    %186 = arith.addf %177, %185 : vector<4x8x1xf32>
    %cst_50 = arith.constant 0.000000e+00 : f32
    %187 = vector.broadcast %cst_50 : f32 to vector<4x8x1xf32>
    %188 = arith.subf %187, %186 : vector<4x8x1xf32>
    %cst_51 = arith.constant 0.000000e+00 : f32
    %189 = vector.broadcast %cst_51 : f32 to vector<4x8x64xf32>
    %190 = vector.extract_strided_slice %1 {offsets = [0, 3, 0], sizes = [4, 1, 64], strides = [1, 1, 1]} : vector<4x7x64xf32> to vector<4x1x64xf32>
    %c0_i32_52 = arith.constant 0 : i32
    %191 = vector.broadcast %c0_i32_52 : i32 to vector<4x8x1xi32>
    %192 = arith.cmpi eq, %167, %191 : vector<4x8x1xi32>
    %193 = vector.shape_cast %192 : vector<4x8x1xi1> to vector<4x8x1xi1>
    %194 = vector.broadcast %193 : vector<4x8x1xi1> to vector<4x8x64xi1>
    %195 = vector.shape_cast %190 : vector<4x1x64xf32> to vector<4x1x64xf32>
    %196 = vector.broadcast %195 : vector<4x1x64xf32> to vector<4x8x64xf32>
    %197 = arith.select %194, %196, %189 : vector<4x8x64xi1>, vector<4x8x64xf32>
    %198 = vector.extract_strided_slice %1 {offsets = [0, 4, 0], sizes = [4, 1, 64], strides = [1, 1, 1]} : vector<4x7x64xf32> to vector<4x1x64xf32>
    %c1_i32_53 = arith.constant 1 : i32
    %199 = vector.broadcast %c1_i32_53 : i32 to vector<4x8x1xi32>
    %200 = arith.cmpi eq, %167, %199 : vector<4x8x1xi32>
    %201 = vector.shape_cast %200 : vector<4x8x1xi1> to vector<4x8x1xi1>
    %202 = vector.broadcast %201 : vector<4x8x1xi1> to vector<4x8x64xi1>
    %203 = vector.shape_cast %198 : vector<4x1x64xf32> to vector<4x1x64xf32>
    %204 = vector.broadcast %203 : vector<4x1x64xf32> to vector<4x8x64xf32>
    %205 = arith.select %202, %204, %197 : vector<4x8x64xi1>, vector<4x8x64xf32>
    %206 = vector.extract_strided_slice %1 {offsets = [0, 5, 0], sizes = [4, 1, 64], strides = [1, 1, 1]} : vector<4x7x64xf32> to vector<4x1x64xf32>
    %c2_i32_54 = arith.constant 2 : i32
    %207 = vector.broadcast %c2_i32_54 : i32 to vector<4x8x1xi32>
    %208 = arith.cmpi eq, %167, %207 : vector<4x8x1xi32>
    %209 = vector.shape_cast %208 : vector<4x8x1xi1> to vector<4x8x1xi1>
    %210 = vector.broadcast %209 : vector<4x8x1xi1> to vector<4x8x64xi1>
    %211 = vector.shape_cast %206 : vector<4x1x64xf32> to vector<4x1x64xf32>
    %212 = vector.broadcast %211 : vector<4x1x64xf32> to vector<4x8x64xf32>
    %213 = arith.select %210, %212, %205 : vector<4x8x64xi1>, vector<4x8x64xf32>
    %214 = vector.extract_strided_slice %1 {offsets = [0, 6, 0], sizes = [4, 1, 64], strides = [1, 1, 1]} : vector<4x7x64xf32> to vector<4x1x64xf32>
    %c3_i32 = arith.constant 3 : i32
    %215 = vector.broadcast %c3_i32 : i32 to vector<4x8x1xi32>
    %216 = arith.cmpi eq, %167, %215 : vector<4x8x1xi32>
    %217 = vector.shape_cast %216 : vector<4x8x1xi1> to vector<4x8x1xi1>
    %218 = vector.broadcast %217 : vector<4x8x1xi1> to vector<4x8x64xi1>
    %219 = vector.shape_cast %214 : vector<4x1x64xf32> to vector<4x1x64xf32>
    %220 = vector.broadcast %219 : vector<4x1x64xf32> to vector<4x8x64xf32>
    %221 = arith.select %218, %220, %213 : vector<4x8x64xi1>, vector<4x8x64xf32>
    %222 = vector.extract_strided_slice %221 {offsets = [0, 0, 0], sizes = [4, 8, 32], strides = [1, 1, 1]} : vector<4x8x64xf32> to vector<4x8x32xf32>
    %223 = vector.extract_strided_slice %221 {offsets = [0, 0, 32], sizes = [4, 8, 32], strides = [1, 1, 1]} : vector<4x8x64xf32> to vector<4x8x32xf32>
    %cst_55 = arith.constant 0.000000e+00 : f32
    %224 = vector.broadcast %cst_55 : f32 to vector<4x8x32xf32>
    %225 = arith.subf %224, %222 : vector<4x8x32xf32>
    %226 = vector.broadcast %5 : vector<1x8x32xf32> to vector<4x8x32xf32>
    %227 = arith.maximumf %225, %226 : vector<4x8x32xf32>
    %228 = vector.broadcast %5 : vector<1x8x32xf32> to vector<4x8x32xf32>
    %229 = arith.subf %225, %228 : vector<4x8x32xf32>
    %230 = math.absf %229 : vector<4x8x32xf32>
    %cst_56 = arith.constant 0.000000e+00 : f32
    %231 = vector.broadcast %cst_56 : f32 to vector<4x8x32xf32>
    %232 = arith.subf %231, %230 : vector<4x8x32xf32>
    %233 = math.exp %232 : vector<4x8x32xf32>
    %cst_57 = arith.constant 1.000000e+00 : f32
    %234 = vector.broadcast %cst_57 : f32 to vector<4x8x32xf32>
    %235 = arith.addf %234, %233 : vector<4x8x32xf32>
    %236 = math.log %235 : vector<4x8x32xf32>
    %237 = arith.addf %227, %236 : vector<4x8x32xf32>
    %cst_58 = arith.constant 0.000000e+00 : f32
    %238 = vector.broadcast %cst_58 : f32 to vector<4x8x32xf32>
    %239 = arith.subf %238, %237 : vector<4x8x32xf32>
    %cst_59 = arith.constant 0.000000e+00 : f32
    %240 = vector.broadcast %cst_59 : f32 to vector<4x8x32xf32>
    %241 = arith.subf %240, %223 : vector<4x8x32xf32>
    %242 = vector.broadcast %3 : vector<1x8x32xf32> to vector<4x8x32xf32>
    %243 = arith.maximumf %241, %242 : vector<4x8x32xf32>
    %244 = vector.broadcast %3 : vector<1x8x32xf32> to vector<4x8x32xf32>
    %245 = arith.subf %241, %244 : vector<4x8x32xf32>
    %246 = math.absf %245 : vector<4x8x32xf32>
    %cst_60 = arith.constant 0.000000e+00 : f32
    %247 = vector.broadcast %cst_60 : f32 to vector<4x8x32xf32>
    %248 = arith.subf %247, %246 : vector<4x8x32xf32>
    %249 = math.exp %248 : vector<4x8x32xf32>
    %cst_61 = arith.constant 1.000000e+00 : f32
    %250 = vector.broadcast %cst_61 : f32 to vector<4x8x32xf32>
    %251 = arith.addf %250, %249 : vector<4x8x32xf32>
    %252 = math.log %251 : vector<4x8x32xf32>
    %253 = arith.addf %243, %252 : vector<4x8x32xf32>
    %cst_62 = arith.constant 0.000000e+00 : f32
    %254 = vector.broadcast %cst_62 : f32 to vector<4x8x32xf32>
    %255 = arith.subf %254, %253 : vector<4x8x32xf32>
    %256 = arith.maximumf %239, %255 : vector<4x8x32xf32>
    %257 = arith.subf %239, %255 : vector<4x8x32xf32>
    %258 = math.absf %257 : vector<4x8x32xf32>
    %cst_63 = arith.constant 0.000000e+00 : f32
    %259 = vector.broadcast %cst_63 : f32 to vector<4x8x32xf32>
    %260 = arith.subf %259, %258 : vector<4x8x32xf32>
    %261 = math.exp %260 : vector<4x8x32xf32>
    %cst_64 = arith.constant 1.000000e+00 : f32
    %262 = vector.broadcast %cst_64 : f32 to vector<4x8x32xf32>
    %263 = arith.addf %262, %261 : vector<4x8x32xf32>
    %264 = math.log %263 : vector<4x8x32xf32>
    %265 = arith.addf %256, %264 : vector<4x8x32xf32>
    %cst_65 = arith.constant 0.000000e+00 : f32
    %266 = vector.broadcast %cst_65 : f32 to vector<4x8x32xf32>
    %267 = arith.subf %266, %265 : vector<4x8x32xf32>
    %cst_66 = arith.constant dense<0xFF800000> : vector<4x8xf32>
    %268 = vector.multi_reduction <maximumf>, %267, %cst_66 [2] : vector<4x8x32xf32> to vector<4x8xf32>
    %269 = vector.shape_cast %268 : vector<4x8xf32> to vector<4x8x1xf32>
    %270 = vector.broadcast %269 : vector<4x8x1xf32> to vector<4x8x32xf32>
    %271 = arith.subf %267, %270 : vector<4x8x32xf32>
    %272 = math.exp %271 : vector<4x8x32xf32>
    %cst_67 = arith.constant dense<0.000000e+00> : vector<4x8xf32>
    %273 = vector.multi_reduction <add>, %272, %cst_67 [2] : vector<4x8x32xf32> to vector<4x8xf32>
    %274 = vector.shape_cast %273 : vector<4x8xf32> to vector<4x8x1xf32>
    %275 = math.log %274 : vector<4x8x1xf32>
    %276 = arith.addf %269, %275 : vector<4x8x1xf32>
    %cst_68 = arith.constant 0.000000e+00 : f32
    %277 = vector.broadcast %cst_68 : f32 to vector<4x8x1xf32>
    %278 = arith.subf %277, %276 : vector<4x8x1xf32>
    %cst_69 = arith.constant 0.000000e+00 : f32
    %279 = vector.broadcast %cst_69 : f32 to vector<4x8x1xf32>
    %280 = arith.cmpf oge, %278, %279 : vector<4x8x1xf32>
    %281 = arith.extui %280 : vector<4x8x1xi1> to vector<4x8x1xi32>
    %282 = arith.sitofp %281 : vector<4x8x1xi32> to vector<4x8x1xf32>
    %c2_i32_70 = arith.constant 2 : i32
    %283 = vector.broadcast %c2_i32_70 : i32 to vector<4x8x1xi32>
    %284 = arith.muli %283, %167 : vector<4x8x1xi32>
    %285 = arith.extui %280 : vector<4x8x1xi1> to vector<4x8x1xi32>
    %286 = arith.addi %284, %285 : vector<4x8x1xi32>
    %cst_71 = arith.constant 2.000000e+00 : f32
    %287 = vector.broadcast %cst_71 : f32 to vector<4x8x1xf32>
    %288 = arith.mulf %287, %282 : vector<4x8x1xf32>
    %cst_72 = arith.constant 1.000000e+00 : f32
    %289 = vector.broadcast %cst_72 : f32 to vector<4x8x1xf32>
    %290 = arith.subf %288, %289 : vector<4x8x1xf32>
    %291 = arith.mulf %290, %278 : vector<4x8x1xf32>
    %cst_73 = arith.constant 0.000000e+00 : f32
    %292 = vector.broadcast %cst_73 : f32 to vector<4x8x1xf32>
    %293 = arith.subf %292, %188 : vector<4x8x1xf32>
    %cst_74 = arith.constant 0.000000e+00 : f32
    %294 = vector.broadcast %cst_74 : f32 to vector<4x8x1xf32>
    %295 = arith.subf %294, %291 : vector<4x8x1xf32>
    %296 = arith.maximumf %293, %295 : vector<4x8x1xf32>
    %297 = arith.subf %293, %295 : vector<4x8x1xf32>
    %298 = math.absf %297 : vector<4x8x1xf32>
    %cst_75 = arith.constant 0.000000e+00 : f32
    %299 = vector.broadcast %cst_75 : f32 to vector<4x8x1xf32>
    %300 = arith.subf %299, %298 : vector<4x8x1xf32>
    %301 = math.exp %300 : vector<4x8x1xf32>
    %cst_76 = arith.constant 1.000000e+00 : f32
    %302 = vector.broadcast %cst_76 : f32 to vector<4x8x1xf32>
    %303 = arith.addf %302, %301 : vector<4x8x1xf32>
    %304 = math.log %303 : vector<4x8x1xf32>
    %305 = arith.addf %296, %304 : vector<4x8x1xf32>
    %cst_77 = arith.constant 0.000000e+00 : f32
    %306 = vector.broadcast %cst_77 : f32 to vector<4x8x1xf32>
    %307 = arith.subf %306, %305 : vector<4x8x1xf32>
    %cst_78 = arith.constant 0.000000e+00 : f32
    %308 = vector.broadcast %cst_78 : f32 to vector<4x8x1xf32>
    %309 = arith.subf %308, %307 : vector<4x8x1xf32>
    %310 = vector.extract_strided_slice %309 {offsets = [0, 0, 0], sizes = [1, 8, 1], strides = [1, 1, 1]} : vector<4x8x1xf32> to vector<1x8x1xf32>
    %311 = vector.shape_cast %310 : vector<1x8x1xf32> to vector<8x1xf32>
    %312 = vector.extract_strided_slice %309 {offsets = [1, 0, 0], sizes = [1, 8, 1], strides = [1, 1, 1]} : vector<4x8x1xf32> to vector<1x8x1xf32>
    %313 = vector.shape_cast %312 : vector<1x8x1xf32> to vector<8x1xf32>
    %314 = arith.maximumf %311, %313 : vector<8x1xf32>
    %315 = arith.subf %311, %313 : vector<8x1xf32>
    %316 = math.absf %315 : vector<8x1xf32>
    %cst_79 = arith.constant 0.000000e+00 : f32
    %317 = vector.broadcast %cst_79 : f32 to vector<8x1xf32>
    %318 = arith.subf %317, %316 : vector<8x1xf32>
    %319 = math.exp %318 : vector<8x1xf32>
    %cst_80 = arith.constant 1.000000e+00 : f32
    %320 = vector.broadcast %cst_80 : f32 to vector<8x1xf32>
    %321 = arith.addf %320, %319 : vector<8x1xf32>
    %322 = math.log %321 : vector<8x1xf32>
    %323 = arith.addf %314, %322 : vector<8x1xf32>
    %324 = vector.extract_strided_slice %309 {offsets = [2, 0, 0], sizes = [1, 8, 1], strides = [1, 1, 1]} : vector<4x8x1xf32> to vector<1x8x1xf32>
    %325 = vector.shape_cast %324 : vector<1x8x1xf32> to vector<8x1xf32>
    %326 = arith.maximumf %323, %325 : vector<8x1xf32>
    %327 = arith.subf %323, %325 : vector<8x1xf32>
    %328 = math.absf %327 : vector<8x1xf32>
    %cst_81 = arith.constant 0.000000e+00 : f32
    %329 = vector.broadcast %cst_81 : f32 to vector<8x1xf32>
    %330 = arith.subf %329, %328 : vector<8x1xf32>
    %331 = math.exp %330 : vector<8x1xf32>
    %cst_82 = arith.constant 1.000000e+00 : f32
    %332 = vector.broadcast %cst_82 : f32 to vector<8x1xf32>
    %333 = arith.addf %332, %331 : vector<8x1xf32>
    %334 = math.log %333 : vector<8x1xf32>
    %335 = arith.addf %326, %334 : vector<8x1xf32>
    %336 = vector.extract_strided_slice %309 {offsets = [3, 0, 0], sizes = [1, 8, 1], strides = [1, 1, 1]} : vector<4x8x1xf32> to vector<1x8x1xf32>
    %337 = vector.shape_cast %336 : vector<1x8x1xf32> to vector<8x1xf32>
    %338 = arith.maximumf %335, %337 : vector<8x1xf32>
    %339 = arith.subf %335, %337 : vector<8x1xf32>
    %340 = math.absf %339 : vector<8x1xf32>
    %cst_83 = arith.constant 0.000000e+00 : f32
    %341 = vector.broadcast %cst_83 : f32 to vector<8x1xf32>
    %342 = arith.subf %341, %340 : vector<8x1xf32>
    %343 = math.exp %342 : vector<8x1xf32>
    %cst_84 = arith.constant 1.000000e+00 : f32
    %344 = vector.broadcast %cst_84 : f32 to vector<8x1xf32>
    %345 = arith.addf %344, %343 : vector<8x1xf32>
    %346 = math.log %345 : vector<8x1xf32>
    %347 = arith.addf %338, %346 : vector<8x1xf32>
    %cst_85 = arith.constant 0.000000e+00 : f32
    %348 = vector.broadcast %cst_85 : f32 to vector<8x1xf32>
    %349 = arith.subf %348, %347 : vector<8x1xf32>
    %c0_86 = arith.constant 0 : index
    %c0_87 = arith.constant 0 : index
    %350 = vector.load %arg4[%c0_86, %c0_87] : memref<8x1xf32, #tpu.memory_space<vmem>>, vector<8x1xf32>
    tpu.vector_store %arg4[%c0_86, %c0_87], %349 {strides = array<i32>} : memref<8x1xf32, #tpu.memory_space<vmem>>, vector<8x1xf32>,
    %cst_88 = arith.constant 0.000000e+00 : f32
    %351 = vector.broadcast %cst_88 : f32 to vector<4x8x16xf32>
    %352 = vector.extract_strided_slice %2 {offsets = [0, 0, 0], sizes = [4, 1, 16], strides = [1, 1, 1]} : vector<4x8x16xf32> to vector<4x1x16xf32>
    %c0_i32_89 = arith.constant 0 : i32
    %353 = vector.broadcast %c0_i32_89 : i32 to vector<4x8x1xi32>
    %354 = arith.cmpi eq, %286, %353 : vector<4x8x1xi32>
    %355 = vector.shape_cast %354 : vector<4x8x1xi1> to vector<4x8x1xi1>
    %356 = vector.broadcast %355 : vector<4x8x1xi1> to vector<4x8x16xi1>
    %357 = vector.shape_cast %352 : vector<4x1x16xf32> to vector<4x1x16xf32>
    %358 = vector.broadcast %357 : vector<4x1x16xf32> to vector<4x8x16xf32>
    %359 = arith.select %356, %358, %351 : vector<4x8x16xi1>, vector<4x8x16xf32>
    %360 = vector.extract_strided_slice %2 {offsets = [0, 1, 0], sizes = [4, 1, 16], strides = [1, 1, 1]} : vector<4x8x16xf32> to vector<4x1x16xf32>
    %c1_i32_90 = arith.constant 1 : i32
    %361 = vector.broadcast %c1_i32_90 : i32 to vector<4x8x1xi32>
    %362 = arith.cmpi eq, %286, %361 : vector<4x8x1xi32>
    %363 = vector.shape_cast %362 : vector<4x8x1xi1> to vector<4x8x1xi1>
    %364 = vector.broadcast %363 : vector<4x8x1xi1> to vector<4x8x16xi1>
    %365 = vector.shape_cast %360 : vector<4x1x16xf32> to vector<4x1x16xf32>
    %366 = vector.broadcast %365 : vector<4x1x16xf32> to vector<4x8x16xf32>
    %367 = arith.select %364, %366, %359 : vector<4x8x16xi1>, vector<4x8x16xf32>
    %368 = vector.extract_strided_slice %2 {offsets = [0, 2, 0], sizes = [4, 1, 16], strides = [1, 1, 1]} : vector<4x8x16xf32> to vector<4x1x16xf32>
    %c2_i32_91 = arith.constant 2 : i32
    %369 = vector.broadcast %c2_i32_91 : i32 to vector<4x8x1xi32>
    %370 = arith.cmpi eq, %286, %369 : vector<4x8x1xi32>
    %371 = vector.shape_cast %370 : vector<4x8x1xi1> to vector<4x8x1xi1>
    %372 = vector.broadcast %371 : vector<4x8x1xi1> to vector<4x8x16xi1>
    %373 = vector.shape_cast %368 : vector<4x1x16xf32> to vector<4x1x16xf32>
    %374 = vector.broadcast %373 : vector<4x1x16xf32> to vector<4x8x16xf32>
    %375 = arith.select %372, %374, %367 : vector<4x8x16xi1>, vector<4x8x16xf32>
    %376 = vector.extract_strided_slice %2 {offsets = [0, 3, 0], sizes = [4, 1, 16], strides = [1, 1, 1]} : vector<4x8x16xf32> to vector<4x1x16xf32>
    %c3_i32_92 = arith.constant 3 : i32
    %377 = vector.broadcast %c3_i32_92 : i32 to vector<4x8x1xi32>
    %378 = arith.cmpi eq, %286, %377 : vector<4x8x1xi32>
    %379 = vector.shape_cast %378 : vector<4x8x1xi1> to vector<4x8x1xi1>
    %380 = vector.broadcast %379 : vector<4x8x1xi1> to vector<4x8x16xi1>
    %381 = vector.shape_cast %376 : vector<4x1x16xf32> to vector<4x1x16xf32>
    %382 = vector.broadcast %381 : vector<4x1x16xf32> to vector<4x8x16xf32>
    %383 = arith.select %380, %382, %375 : vector<4x8x16xi1>, vector<4x8x16xf32>
    %384 = vector.extract_strided_slice %2 {offsets = [0, 4, 0], sizes = [4, 1, 16], strides = [1, 1, 1]} : vector<4x8x16xf32> to vector<4x1x16xf32>
    %c4_i32 = arith.constant 4 : i32
    %385 = vector.broadcast %c4_i32 : i32 to vector<4x8x1xi32>
    %386 = arith.cmpi eq, %286, %385 : vector<4x8x1xi32>
    %387 = vector.shape_cast %386 : vector<4x8x1xi1> to vector<4x8x1xi1>
    %388 = vector.broadcast %387 : vector<4x8x1xi1> to vector<4x8x16xi1>
    %389 = vector.shape_cast %384 : vector<4x1x16xf32> to vector<4x1x16xf32>
    %390 = vector.broadcast %389 : vector<4x1x16xf32> to vector<4x8x16xf32>
    %391 = arith.select %388, %390, %383 : vector<4x8x16xi1>, vector<4x8x16xf32>
    %392 = vector.extract_strided_slice %2 {offsets = [0, 5, 0], sizes = [4, 1, 16], strides = [1, 1, 1]} : vector<4x8x16xf32> to vector<4x1x16xf32>
    %c5_i32 = arith.constant 5 : i32
    %393 = vector.broadcast %c5_i32 : i32 to vector<4x8x1xi32>
    %394 = arith.cmpi eq, %286, %393 : vector<4x8x1xi32>
    %395 = vector.shape_cast %394 : vector<4x8x1xi1> to vector<4x8x1xi1>
    %396 = vector.broadcast %395 : vector<4x8x1xi1> to vector<4x8x16xi1>
    %397 = vector.shape_cast %392 : vector<4x1x16xf32> to vector<4x1x16xf32>
    %398 = vector.broadcast %397 : vector<4x1x16xf32> to vector<4x8x16xf32>
    %399 = arith.select %396, %398, %391 : vector<4x8x16xi1>, vector<4x8x16xf32>
    %400 = vector.extract_strided_slice %2 {offsets = [0, 6, 0], sizes = [4, 1, 16], strides = [1, 1, 1]} : vector<4x8x16xf32> to vector<4x1x16xf32>
    %c6_i32 = arith.constant 6 : i32
    %401 = vector.broadcast %c6_i32 : i32 to vector<4x8x1xi32>
    %402 = arith.cmpi eq, %286, %401 : vector<4x8x1xi32>
    %403 = vector.shape_cast %402 : vector<4x8x1xi1> to vector<4x8x1xi1>
    %404 = vector.broadcast %403 : vector<4x8x1xi1> to vector<4x8x16xi1>
    %405 = vector.shape_cast %400 : vector<4x1x16xf32> to vector<4x1x16xf32>
    %406 = vector.broadcast %405 : vector<4x1x16xf32> to vector<4x8x16xf32>
    %407 = arith.select %404, %406, %399 : vector<4x8x16xi1>, vector<4x8x16xf32>
    %408 = vector.extract_strided_slice %2 {offsets = [0, 7, 0], sizes = [4, 1, 16], strides = [1, 1, 1]} : vector<4x8x16xf32> to vector<4x1x16xf32>
    %c7_i32 = arith.constant 7 : i32
    %409 = vector.broadcast %c7_i32 : i32 to vector<4x8x1xi32>
    %410 = arith.cmpi eq, %286, %409 : vector<4x8x1xi32>
    %411 = vector.shape_cast %410 : vector<4x8x1xi1> to vector<4x8x1xi1>
    %412 = vector.broadcast %411 : vector<4x8x1xi1> to vector<4x8x16xi1>
    %413 = vector.shape_cast %408 : vector<4x1x16xf32> to vector<4x1x16xf32>
    %414 = vector.broadcast %413 : vector<4x1x16xf32> to vector<4x8x16xf32>
    %415 = arith.select %412, %414, %407 : vector<4x8x16xi1>, vector<4x8x16xf32>
    %416 = vector.extract_strided_slice %415 {offsets = [0, 0, 0], sizes = [1, 8, 16], strides = [1, 1, 1]} : vector<4x8x16xf32> to vector<1x8x16xf32>
    %417 = vector.shape_cast %416 : vector<1x8x16xf32> to vector<8x16xf32>
    %c0_93 = arith.constant 0 : index
    %c0_94 = arith.constant 0 : index
    %418 = vector.load %arg5[%c0_93, %c0_94] : memref<8x64xf32, #tpu.memory_space<vmem>>, vector<8x16xf32>
    tpu.vector_store %arg5[%c0_93, %c0_94], %417 {strides = array<i32>} : memref<8x64xf32, #tpu.memory_space<vmem>>, vector<8x16xf32>,
    %419 = vector.extract_strided_slice %415 {offsets = [1, 0, 0], sizes = [1, 8, 16], strides = [1, 1, 1]} : vector<4x8x16xf32> to vector<1x8x16xf32>
    %420 = vector.shape_cast %419 : vector<1x8x16xf32> to vector<8x16xf32>
    %c0_95 = arith.constant 0 : index
    %c16 = arith.constant 16 : index
    %421 = vector.load %arg5[%c0_95, %c16] : memref<8x64xf32, #tpu.memory_space<vmem>>, vector<8x16xf32>
    tpu.vector_store %arg5[%c0_95, %c16], %420 {strides = array<i32>} : memref<8x64xf32, #tpu.memory_space<vmem>>, vector<8x16xf32>,
    %422 = vector.extract_strided_slice %415 {offsets = [2, 0, 0], sizes = [1, 8, 16], strides = [1, 1, 1]} : vector<4x8x16xf32> to vector<1x8x16xf32>
    %423 = vector.shape_cast %422 : vector<1x8x16xf32> to vector<8x16xf32>
    %c0_96 = arith.constant 0 : index
    %c32 = arith.constant 32 : index
    %424 = vector.load %arg5[%c0_96, %c32] : memref<8x64xf32, #tpu.memory_space<vmem>>, vector<8x16xf32>
    tpu.vector_store %arg5[%c0_96, %c32], %423 {strides = array<i32>} : memref<8x64xf32, #tpu.memory_space<vmem>>, vector<8x16xf32>,
    %425 = vector.extract_strided_slice %415 {offsets = [3, 0, 0], sizes = [1, 8, 16], strides = [1, 1, 1]} : vector<4x8x16xf32> to vector<1x8x16xf32>
    %426 = vector.shape_cast %425 : vector<1x8x16xf32> to vector<8x16xf32>
    %c0_97 = arith.constant 0 : index
    %c48 = arith.constant 48 : index
    %427 = vector.load %arg5[%c0_97, %c48] : memref<8x64xf32, #tpu.memory_space<vmem>>, vector<8x16xf32>
    tpu.vector_store %arg5[%c0_97, %c48], %426 {strides = array<i32>} : memref<8x64xf32, #tpu.memory_space<vmem>>, vector<8x16xf32>,
    return
  }
  func.func @transform_0(%arg0: i32) -> (i32, i32) {
    %c0_i32 = arith.constant 0 : i32
    %c0_i32_0 = arith.constant 0 : i32
    return %arg0, %c0_i32 : i32, i32
  }
  func.func @transform_1(%arg0: i32) -> (i32, i32, i32) {
    %c0_i32 = arith.constant 0 : i32
    %c0_i32_0 = arith.constant 0 : i32
    %c0_i32_1 = arith.constant 0 : i32
    %c0_i32_2 = arith.constant 0 : i32
    return %c0_i32, %c0_i32_0, %c0_i32_1 : i32, i32, i32
  }
  func.func @transform_2(%arg0: i32) -> (i32, i32, i32) {
    %c0_i32 = arith.constant 0 : i32
    %c0_i32_0 = arith.constant 0 : i32
    %c0_i32_1 = arith.constant 0 : i32
    %c0_i32_2 = arith.constant 0 : i32
    return %c0_i32, %c0_i32_0, %c0_i32_1 : i32, i32, i32
  }
  func.func @transform_3(%arg0: i32) -> (i32, i32) {
    %c0_i32 = arith.constant 0 : i32
    %c0_i32_0 = arith.constant 0 : i32
    return %arg0, %c0_i32 : i32, i32
  }
  func.func @transform_4(%arg0: i32) -> (i32, i32) {
    %c0_i32 = arith.constant 0 : i32
    %c0_i32_0 = arith.constant 0 : i32
    return %arg0, %c0_i32 : i32, i32
  }
}

</mosaic_0001>

<llo_original>
// kernel: tpu_custom_call.1
$region0: #{tpu_custom_call.1}
  #allocation0 [shape = 'u32[]', space=smem, size = 0x4, offset = 0x4, fixed_abs, tag = 'smem constant byte address 0x4 - core index']
  #allocation1 [shape = 'u32[72,128]{1,0:T(1,128)}', space=vmem, size = 0x9000, scoped, tag = 'internal scratch']
  %s0 = inlined_call_operand.vmem [shape: f32[8,32], index: 0, kind: input, shape index: {}]
  %s1 = inlined_call_operand.vmem [shape: f32[4,7,64], index: 1, kind: input, shape index: {}]
  %s2 = inlined_call_operand.vmem [shape: f32[4,8,16], index: 2, kind: input, shape index: {}]
  %s3 = inlined_call_operand.vmem [shape: f32[8,1], index: 3, kind: output, shape index: {0}]
  %s4 = inlined_call_operand.hbm [shape: f32[8,64], index: 4, kind: output, shape index: {1}]
  %5 = xla_tuple %s3, %s4
  %s6 = sld [smem:[#allocation0]]
  $region30: #{tpu_custom_call.1} parent=0
    _
  %s8 = ssub.s32 1, %s6
  %s9 = scalar_select 0, %s8, %s6
  $region1: #{tpu_custom_call.1} parent=0
    #allocation2 [shape = 'u8[4096]{0}', space=vmem, size = 0x1000, scoped, tag = 'output window, operand 1, single buffered']
    #allocation3 [shape = 's32[1]{0}', space=sflag, size = 0x4, scoped, tag = 'scoped memory for tpu_custom_call.1']
    %10 = vsyncpa [#allocation3], 0
    // Predicated region
    $region2: #{tpu_custom_call.1} parent=1 // pred_check
      _
    $region3: #{tpu_custom_call.1} parent=1 // pred_check_branch
      %12 = sbr.rel (0) target = $region5
    $region4: #{tpu_custom_call.1} parent=1 // pred_region
      _
    $region5: #{tpu_custom_call.1} parent=1 // pred_fallthru
      _
    // Predicated region
    $region6: #{tpu_custom_call.1} parent=1 // pred_check
      _
    $region7: #{tpu_custom_call.1} parent=1 // pred_check_branch
      %14 = sbr.rel (0) target = $region9
    $region8: #{tpu_custom_call.1} parent=1 // pred_region
      _
    $region9: #{tpu_custom_call.1} parent=1 // pred_fallthru
      _
    // Predicated region
    $region10: #{tpu_custom_call.1} parent=1 // pred_check
      _
    $region11: #{tpu_custom_call.1} parent=1 // pred_check_branch
      %16 = sbr.rel (0) target = $region13
    $region12: #{tpu_custom_call.1} parent=1 // pred_region
      _
    $region13: #{tpu_custom_call.1} parent=1 // pred_fallthru
      _
    %v17 = vld [vmem:[%s0] sm:$0xff]
    %v18 = vld [vmem:[%s1] sm:$0x7f]
    %v19 = vld [vmem:[%s1 + $0x8] sm:$0x7f]
    %v20 = vld [vmem:[%s1 + $0x10] sm:$0x7f]
    %v21 = vld [vmem:[%s1 + $0x18] sm:$0x7f]
    %v22 = vld [vmem:[%s2] sm:$0xff]
    %v23 = vld [vmem:[%s2 + $0x8] sm:$0xff]
    %v24 = vld [vmem:[%s2 + $0x10] sm:$0xff]
    %v25 = vld [vmem:[%s2 + $0x18] sm:$0xff]
    %v26 = vsub.f32 0.0, %v17
    %v27 = vperm.slane %v18, 0
    %v28 = vperm.slane %v19, 0
    %v29 = vperm.slane %v20, 0
    %v30 = vperm.slane %v21, 0
    %v31 = vsub.f32 0.0, %v27
    %v32 = vsub.f32 0.0, %v28
    %v33 = vsub.f32 0.0, %v29
    %v34 = vsub.f32 0.0, %v30
    %v35 = vmax.f32 %v31, %v26
    %v36 = vmax.f32 %v32, %v26
    %v37 = vmax.f32 %v33, %v26
    %v38 = vmax.f32 %v34, %v26
    %v39 = vsub.f32 %v31, %v26
    %v40 = vsub.f32 %v32, %v26
    %v41 = vsub.f32 %v33, %v26
    %v42 = vsub.f32 %v34, %v26
    %v43 = vand.u32 2147483647, %v39
    %v44 = vand.u32 2147483647, %v40
    %v45 = vand.u32 2147483647, %v41
    %v46 = vand.u32 2147483647, %v42
    %v47 = vsub.f32 0.0, %v43
    %v48 = vsub.f32 0.0, %v44
    %v49 = vsub.f32 0.0, %v45
    %v50 = vsub.f32 0.0, %v46
    %v51 = vmul.f32 %v47, 1.442695
    %v52 = vpow.pop %v51
    %v53 = vmul.f32 %v48, 1.442695
    %v54 = vpow.pop %v53
    %v55 = vmul.f32 %v49, 1.442695
    %v56 = vpow.pop %v55
    %v57 = vmul.f32 %v50, 1.442695
    %v58 = vpow.pop %v57
    %v59 = vadd.f32 %v52, 1.0
    %v60 = vadd.f32 %v54, 1.0
    %v61 = vadd.f32 %v56, 1.0
    %v62 = vadd.f32 %v58, 1.0
    %v63 = vlog2.pop %v59
    %v64 = vmul.f32 %v63, 0.6931472
    %v65 = vlog2.pop %v60
    %v66 = vmul.f32 %v65, 0.6931472
    %v67 = vlog2.pop %v61
    %v68 = vmul.f32 %v67, 0.6931472
    %v69 = vlog2.pop %v62
    %v70 = vmul.f32 %v69, 0.6931472
    %v71 = vadd.f32 %v35, %v64
    %v72 = vadd.f32 %v36, %v66
    %v73 = vadd.f32 %v37, %v68
    %v74 = vadd.f32 %v38, %v70
    %v75 = vsub.f32 0.0, %v71
    %v76 = vsub.f32 0.0, %v72
    %v77 = vsub.f32 0.0, %v73
    %v78 = vsub.f32 0.0, %v74
    %80 = vrot.lane.b32.xlu0 %v17, 32
    %v81 = vpop.permute.xlu0 %80
    %v83 = vmax.f32 %v31, %v81
    %v84 = vmax.f32 %v32, %v81
    %v85 = vmax.f32 %v33, %v81
    %v86 = vmax.f32 %v34, %v81
    %v87 = vsub.f32 %v31, %v81
    %v88 = vsub.f32 %v32, %v81
    %v89 = vsub.f32 %v33, %v81
    %v90 = vsub.f32 %v34, %v81
    %v91 = vand.u32 2147483647, %v87
    %v92 = vand.u32 2147483647, %v88
    %v93 = vand.u32 2147483647, %v89
    %v94 = vand.u32 2147483647, %v90
    %v95 = vsub.f32 0.0, %v91
    %v96 = vsub.f32 0.0, %v92
    %v97 = vsub.f32 0.0, %v93
    %v98 = vsub.f32 0.0, %v94
    %v99 = vmul.f32 %v95, 1.442695
    %v100 = vpow.pop %v99
    %v101 = vmul.f32 %v96, 1.442695
    %v102 = vpow.pop %v101
    %v103 = vmul.f32 %v97, 1.442695
    %v104 = vpow.pop %v103
    %v105 = vmul.f32 %v98, 1.442695
    %v106 = vpow.pop %v105
    %v107 = vadd.f32 %v100, 1.0
    %v108 = vadd.f32 %v102, 1.0
    %v109 = vadd.f32 %v104, 1.0
    %v110 = vadd.f32 %v106, 1.0
    %v111 = vlog2.pop %v107
    %v112 = vmul.f32 %v111, 0.6931472
    %v113 = vlog2.pop %v108
    %v114 = vmul.f32 %v113, 0.6931472
    %v115 = vlog2.pop %v109
    %v116 = vmul.f32 %v115, 0.6931472
    %v117 = vlog2.pop %v110
    %v118 = vmul.f32 %v117, 0.6931472
    %v119 = vadd.f32 %v83, %v112
    %v120 = vadd.f32 %v84, %v114
    %v121 = vadd.f32 %v85, %v116
    %v122 = vadd.f32 %v86, %v118
    %v123 = vsub.f32 0.0, %v119
    %v124 = vsub.f32 0.0, %v120
    %v125 = vsub.f32 0.0, %v121
    %v126 = vsub.f32 0.0, %v122
    %131 = vrot.lane.b32.xlu0 %v123, 96
    %v132 = vpop.permute.xlu0 %131
    %133 = vrot.lane.b32.xlu0 %v124, 96
    %v134 = vpop.permute.xlu0 %133
    %135 = vrot.lane.b32.xlu0 %v125, 96
    %v136 = vpop.permute.xlu0 %135
    %137 = vrot.lane.b32.xlu0 %v126, 96
    %v138 = vpop.permute.xlu0 %137
    %v143 = vmax.f32 %v75, %v132
    %v144 = vmax.f32 %v76, %v134
    %v145 = vmax.f32 %v77, %v136
    %v146 = vmax.f32 %v78, %v138
    %v147 = vsub.f32 %v75, %v132
    %v148 = vsub.f32 %v76, %v134
    %v149 = vsub.f32 %v77, %v136
    %v150 = vsub.f32 %v78, %v138
    %v151 = vand.u32 2147483647, %v147
    %v152 = vand.u32 2147483647, %v148
    %v153 = vand.u32 2147483647, %v149
    %v154 = vand.u32 2147483647, %v150
    %v155 = vsub.f32 0.0, %v151
    %v156 = vsub.f32 0.0, %v152
    %v157 = vsub.f32 0.0, %v153
    %v158 = vsub.f32 0.0, %v154
    %v159 = vmul.f32 %v155, 1.442695
    %v160 = vpow.pop %v159
    %v161 = vmul.f32 %v156, 1.442695
    %v162 = vpow.pop %v161
    %v163 = vmul.f32 %v157, 1.442695
    %v164 = vpow.pop %v163
    %v165 = vmul.f32 %v158, 1.442695
    %v166 = vpow.pop %v165
    %v167 = vadd.f32 %v160, 1.0
    %v168 = vadd.f32 %v162, 1.0
    %v169 = vadd.f32 %v164, 1.0
    %v170 = vadd.f32 %v166, 1.0
    %v171 = vlog2.pop %v167
    %v172 = vmul.f32 %v171, 0.6931472
    %v173 = vlog2.pop %v168
    %v174 = vmul.f32 %v173, 0.6931472
    %v175 = vlog2.pop %v169
    %v176 = vmul.f32 %v175, 0.6931472
    %v177 = vlog2.pop %v170
    %v178 = vmul.f32 %v177, 0.6931472
    %v179 = vadd.f32 %v143, %v172
    %v180 = vadd.f32 %v144, %v174
    %v181 = vadd.f32 %v145, %v176
    %v182 = vadd.f32 %v146, %v178
    %v183 = vsub.f32 0.0, %v179
    %v184 = vsub.f32 0.0, %v180
    %v185 = vsub.f32 0.0, %v181
    %v186 = vsub.f32 0.0, %v182
    %vm187 = vcmask 261120
    %v188 = vsel %vm187, %v183, -inf
    %189 = vmax.xlane.f32.xlu0 %v188
    %v190 = vpop.xlane.xlu0 %189
    %v191 = vsel %vm187, %v184, -inf
    %192 = vmax.xlane.f32.xlu0 %v191
    %v193 = vpop.xlane.xlu0 %192
    %v194 = vsel %vm187, %v185, -inf
    %195 = vmax.xlane.f32.xlu0 %v194
    %v196 = vpop.xlane.xlu0 %195
    %v197 = vsel %vm187, %v186, -inf
    %198 = vmax.xlane.f32.xlu0 %v197
    %v199 = vpop.xlane.xlu0 %198
    %v200 = vsub.f32 %v183, %v190
    %v201 = vsub.f32 %v184, %v193
    %v202 = vsub.f32 %v185, %v196
    %v203 = vsub.f32 %v186, %v199
    %v204 = vmul.f32 %v200, 1.442695
    %v205 = vpow.pop %v204
    %v206 = vmul.f32 %v201, 1.442695
    %v207 = vpow.pop %v206
    %v208 = vmul.f32 %v202, 1.442695
    %v209 = vpow.pop %v208
    %v210 = vmul.f32 %v203, 1.442695
    %v211 = vpow.pop %v210
    %v212 = vsel %vm187, %v205, 0.0
    %213 = vadd.xlane.f32.xlu0 %v212
    %v214 = vpop.xlane.xlu0 %213
    %v215 = vsel %vm187, %v207, 0.0
    %216 = vadd.xlane.f32.xlu0 %v215
    %v217 = vpop.xlane.xlu0 %216
    %v218 = vsel %vm187, %v209, 0.0
    %219 = vadd.xlane.f32.xlu0 %v218
    %v220 = vpop.xlane.xlu0 %219
    %v221 = vsel %vm187, %v211, 0.0
    %222 = vadd.xlane.f32.xlu0 %v221
    %v223 = vpop.xlane.xlu0 %222
    %v224 = vlog2.pop %v214
    %v225 = vmul.f32 %v224, 0.6931472
    %v226 = vlog2.pop %v217
    %v227 = vmul.f32 %v226, 0.6931472
    %v228 = vlog2.pop %v220
    %v229 = vmul.f32 %v228, 0.6931472
    %v230 = vlog2.pop %v223
    %v231 = vmul.f32 %v230, 0.6931472
    %v232 = vadd.f32 %v190, %v225
    %v233 = vadd.f32 %v193, %v227
    %v234 = vadd.f32 %v196, %v229
    %v235 = vadd.f32 %v199, %v231
    %v236 = vsub.f32 0.0, %v232
    %v237 = vsub.f32 0.0, %v233
    %v238 = vsub.f32 0.0, %v234
    %v239 = vsub.f32 0.0, %v235
    %vm240 = vcmp.ge.f32.partialorder %v236, 0.0
    %vm241 = vcmp.ge.f32.partialorder %v237, 0.0
    %vm242 = vcmp.ge.f32.partialorder %v238, 0.0
    %vm243 = vcmp.ge.f32.partialorder %v239, 0.0
    %v244 = vsel %vm240, 1, 0
    %v245 = vsel %vm241, 1, 0
    %v246 = vsel %vm242, 1, 0
    %v247 = vsel %vm243, 1, 0
    %v248 = vcvt.s32.f32 %v244
    %v249 = vcvt.s32.f32 %v245
    %v250 = vcvt.s32.f32 %v246
    %v251 = vcvt.s32.f32 %v247
    %v252 = vmul.f32 %v248, 2.0
    %v253 = vmul.f32 %v249, 2.0
    %v254 = vmul.f32 %v250, 2.0
    %v255 = vmul.f32 %v251, 2.0
    %v256 = vsub.f32 %v252, 1.0
    %v257 = vsub.f32 %v253, 1.0
    %v258 = vsub.f32 %v254, 1.0
    %v259 = vsub.f32 %v255, 1.0
    %v260 = vmul.f32 %v256, %v236
    %v261 = vmul.f32 %v257, %v237
    %v262 = vmul.f32 %v258, %v238
    %v263 = vmul.f32 %v259, %v239
    %vm264 = vcmp.eq.s32.totalorder %v244, 0
    %vm265 = vcmp.eq.s32.totalorder %v245, 0
    %vm266 = vcmp.eq.s32.totalorder %v246, 0
    %vm267 = vcmp.eq.s32.totalorder %v247, 0
    %v268 = vsel %vm264, 1, 0
    %v269 = vsel %vm265, 1, 0
    %v270 = vsel %vm266, 1, 0
    %v271 = vsel %vm267, 1, 0
    %vm272 = vcmp.eq.s32.totalorder %v268, 1
    %vm273 = vcmp.eq.s32.totalorder %v269, 1
    %vm274 = vcmp.eq.s32.totalorder %v270, 1
    %vm275 = vcmp.eq.s32.totalorder %v271, 1
    %v276 = vperm.slane %v18, 1
    %v277 = vperm.slane %v19, 1
    %v278 = vperm.slane %v20, 1
    %v279 = vperm.slane %v21, 1
    %v280 = vsel %vm272, %v276, 0.0
    %v281 = vsel %vm273, %v277, 0.0
    %v282 = vsel %vm274, %v278, 0.0
    %v283 = vsel %vm275, %v279, 0.0
    %vm284 = vcmp.eq.s32.totalorder %v244, 1
    %vm285 = vcmp.eq.s32.totalorder %v245, 1
    %vm286 = vcmp.eq.s32.totalorder %v246, 1
    %vm287 = vcmp.eq.s32.totalorder %v247, 1
    %v288 = vsel %vm284, 1, 0
    %v289 = vsel %vm285, 1, 0
    %v290 = vsel %vm286, 1, 0
    %v291 = vsel %vm287, 1, 0
    %vm292 = vcmp.eq.s32.totalorder %v288, 1
    %vm293 = vcmp.eq.s32.totalorder %v289, 1
    %vm294 = vcmp.eq.s32.totalorder %v290, 1
    %vm295 = vcmp.eq.s32.totalorder %v291, 1
    %v296 = vperm.slane %v18, 2
    %v297 = vperm.slane %v19, 2
    %v298 = vperm.slane %v20, 2
    %v299 = vperm.slane %v21, 2
    %v300 = vsel %vm292, %v296, %v280
    %v301 = vsel %vm293, %v297, %v281
    %v302 = vsel %vm294, %v298, %v282
    %v303 = vsel %vm295, %v299, %v283
    %v304 = vsub.f32 0.0, %v300
    %v305 = vsub.f32 0.0, %v301
    %v306 = vsub.f32 0.0, %v302
    %v307 = vsub.f32 0.0, %v303
    %v308 = vmax.f32 %v304, %v26
    %v309 = vmax.f32 %v305, %v26
    %v310 = vmax.f32 %v306, %v26
    %v311 = vmax.f32 %v307, %v26
    %v312 = vsub.f32 %v304, %v26
    %v313 = vsub.f32 %v305, %v26
    %v314 = vsub.f32 %v306, %v26
    %v315 = vsub.f32 %v307, %v26
    %v316 = vand.u32 2147483647, %v312
    %v317 = vand.u32 2147483647, %v313
    %v318 = vand.u32 2147483647, %v314
    %v319 = vand.u32 2147483647, %v315
    %v320 = vsub.f32 0.0, %v316
    %v321 = vsub.f32 0.0, %v317
    %v322 = vsub.f32 0.0, %v318
    %v323 = vsub.f32 0.0, %v319
    %v324 = vmul.f32 %v320, 1.442695
    %v325 = vpow.pop %v324
    %v326 = vmul.f32 %v321, 1.442695
    %v327 = vpow.pop %v326
    %v328 = vmul.f32 %v322, 1.442695
    %v329 = vpow.pop %v328
    %v330 = vmul.f32 %v323, 1.442695
    %v331 = vpow.pop %v330
    %v332 = vadd.f32 %v325, 1.0
    %v333 = vadd.f32 %v327, 1.0
    %v334 = vadd.f32 %v329, 1.0
    %v335 = vadd.f32 %v331, 1.0
    %v336 = vlog2.pop %v332
    %v337 = vmul.f32 %v336, 0.6931472
    %v338 = vlog2.pop %v333
    %v339 = vmul.f32 %v338, 0.6931472
    %v340 = vlog2.pop %v334
    %v341 = vmul.f32 %v340, 0.6931472
    %v342 = vlog2.pop %v335
    %v343 = vmul.f32 %v342, 0.6931472
    %v344 = vadd.f32 %v308, %v337
    %v345 = vadd.f32 %v309, %v339
    %v346 = vadd.f32 %v310, %v341
    %v347 = vadd.f32 %v311, %v343
    %v348 = vsub.f32 0.0, %v344
    %v349 = vsub.f32 0.0, %v345
    %v350 = vsub.f32 0.0, %v346
    %v351 = vsub.f32 0.0, %v347
    %v352 = vmax.f32 %v304, %v81
    %v353 = vmax.f32 %v305, %v81
    %v354 = vmax.f32 %v306, %v81
    %v355 = vmax.f32 %v307, %v81
    %v356 = vsub.f32 %v304, %v81
    %v357 = vsub.f32 %v305, %v81
    %v358 = vsub.f32 %v306, %v81
    %v359 = vsub.f32 %v307, %v81
    %v360 = vand.u32 2147483647, %v356
    %v361 = vand.u32 2147483647, %v357
    %v362 = vand.u32 2147483647, %v358
    %v363 = vand.u32 2147483647, %v359
    %v364 = vsub.f32 0.0, %v360
    %v365 = vsub.f32 0.0, %v361
    %v366 = vsub.f32 0.0, %v362
    %v367 = vsub.f32 0.0, %v363
    %v368 = vmul.f32 %v364, 1.442695
    %v369 = vpow.pop %v368
    %v370 = vmul.f32 %v365, 1.442695
    %v371 = vpow.pop %v370
    %v372 = vmul.f32 %v366, 1.442695
    %v373 = vpow.pop %v372
    %v374 = vmul.f32 %v367, 1.442695
    %v375 = vpow.pop %v374
    %v376 = vadd.f32 %v369, 1.0
    %v377 = vadd.f32 %v371, 1.0
    %v378 = vadd.f32 %v373, 1.0
    %v379 = vadd.f32 %v375, 1.0
    %v380 = vlog2.pop %v376
    %v381 = vmul.f32 %v380, 0.6931472
    %v382 = vlog2.pop %v377
    %v383 = vmul.f32 %v382, 0.6931472
    %v384 = vlog2.pop %v378
    %v385 = vmul.f32 %v384, 0.6931472
    %v386 = vlog2.pop %v379
    %v387 = vmul.f32 %v386, 0.6931472
    %v388 = vadd.f32 %v352, %v381
    %v389 = vadd.f32 %v353, %v383
    %v390 = vadd.f32 %v354, %v385
    %v391 = vadd.f32 %v355, %v387
    %v392 = vsub.f32 0.0, %v388
    %v393 = vsub.f32 0.0, %v389
    %v394 = vsub.f32 0.0, %v390
    %v395 = vsub.f32 0.0, %v391
    %400 = vrot.lane.b32.xlu0 %v392, 96
    %v401 = vpop.permute.xlu0 %400
    %402 = vrot.lane.b32.xlu0 %v393, 96
    %v403 = vpop.permute.xlu0 %402
    %404 = vrot.lane.b32.xlu0 %v394, 96
    %v405 = vpop.permute.xlu0 %404
    %406 = vrot.lane.b32.xlu0 %v395, 96
    %v407 = vpop.permute.xlu0 %406
    %v412 = vmax.f32 %v348, %v401
    %v413 = vmax.f32 %v349, %v403
    %v414 = vmax.f32 %v350, %v405
    %v415 = vmax.f32 %v351, %v407
    %v416 = vsub.f32 %v348, %v401
    %v417 = vsub.f32 %v349, %v403
    %v418 = vsub.f32 %v350, %v405
    %v419 = vsub.f32 %v351, %v407
    %v420 = vand.u32 2147483647, %v416
    %v421 = vand.u32 2147483647, %v417
    %v422 = vand.u32 2147483647, %v418
    %v423 = vand.u32 2147483647, %v419
    %v424 = vsub.f32 0.0, %v420
    %v425 = vsub.f32 0.0, %v421
    %v426 = vsub.f32 0.0, %v422
    %v427 = vsub.f32 0.0, %v423
    %v428 = vmul.f32 %v424, 1.442695
    %v429 = vpow.pop %v428
    %v430 = vmul.f32 %v425, 1.442695
    %v431 = vpow.pop %v430
    %v432 = vmul.f32 %v426, 1.442695
    %v433 = vpow.pop %v432
    %v434 = vmul.f32 %v427, 1.442695
    %v435 = vpow.pop %v434
    %v436 = vadd.f32 %v429, 1.0
    %v437 = vadd.f32 %v431, 1.0
    %v438 = vadd.f32 %v433, 1.0
    %v439 = vadd.f32 %v435, 1.0
    %v440 = vlog2.pop %v436
    %v441 = vmul.f32 %v440, 0.6931472
    %v442 = vlog2.pop %v437
    %v443 = vmul.f32 %v442, 0.6931472
    %v444 = vlog2.pop %v438
    %v445 = vmul.f32 %v444, 0.6931472
    %v446 = vlog2.pop %v439
    %v447 = vmul.f32 %v446, 0.6931472
    %v448 = vadd.f32 %v412, %v441
    %v449 = vadd.f32 %v413, %v443
    %v450 = vadd.f32 %v414, %v445
    %v451 = vadd.f32 %v415, %v447
    %v452 = vsub.f32 0.0, %v448
    %v453 = vsub.f32 0.0, %v449
    %v454 = vsub.f32 0.0, %v450
    %v455 = vsub.f32 0.0, %v451
    %v456 = vsel %vm187, %v452, -inf
    %457 = vmax.xlane.f32.xlu0 %v456
    %v458 = vpop.xlane.xlu0 %457
    %v459 = vsel %vm187, %v453, -inf
    %460 = vmax.xlane.f32.xlu0 %v459
    %v461 = vpop.xlane.xlu0 %460
    %v462 = vsel %vm187, %v454, -inf
    %463 = vmax.xlane.f32.xlu0 %v462
    %v464 = vpop.xlane.xlu0 %463
    %v465 = vsel %vm187, %v455, -inf
    %466 = vmax.xlane.f32.xlu0 %v465
    %v467 = vpop.xlane.xlu0 %466
    %v468 = vsub.f32 %v452, %v458
    %v469 = vsub.f32 %v453, %v461
    %v470 = vsub.f32 %v454, %v464
    %v471 = vsub.f32 %v455, %v467
    %v472 = vmul.f32 %v468, 1.442695
    %v473 = vpow.pop %v472
    %v474 = vmul.f32 %v469, 1.442695
    %v475 = vpow.pop %v474
    %v476 = vmul.f32 %v470, 1.442695
    %v477 = vpow.pop %v476
    %v478 = vmul.f32 %v471, 1.442695
    %v479 = vpow.pop %v478
    %v480 = vsel %vm187, %v473, 0.0
    %481 = vadd.xlane.f32.xlu0 %v480
    %v482 = vpop.xlane.xlu0 %481
    %v483 = vsel %vm187, %v475, 0.0
    %484 = vadd.xlane.f32.xlu0 %v483
    %v485 = vpop.xlane.xlu0 %484
    %v486 = vsel %vm187, %v477, 0.0
    %487 = vadd.xlane.f32.xlu0 %v486
    %v488 = vpop.xlane.xlu0 %487
    %v489 = vsel %vm187, %v479, 0.0
    %490 = vadd.xlane.f32.xlu0 %v489
    %v491 = vpop.xlane.xlu0 %490
    %v492 = vlog2.pop %v482
    %v493 = vmul.f32 %v492, 0.6931472
    %v494 = vlog2.pop %v485
    %v495 = vmul.f32 %v494, 0.6931472
    %v496 = vlog2.pop %v488
    %v497 = vmul.f32 %v496, 0.6931472
    %v498 = vlog2.pop %v491
    %v499 = vmul.f32 %v498, 0.6931472
    %v500 = vadd.f32 %v458, %v493
    %v501 = vadd.f32 %v461, %v495
    %v502 = vadd.f32 %v464, %v497
    %v503 = vadd.f32 %v467, %v499
    %v504 = vsub.f32 0.0, %v500
    %v505 = vsub.f32 0.0, %v501
    %v506 = vsub.f32 0.0, %v502
    %v507 = vsub.f32 0.0, %v503
    %vm508 = vcmp.ge.f32.partialorder %v504, 0.0
    %vm509 = vcmp.ge.f32.partialorder %v505, 0.0
    %vm510 = vcmp.ge.f32.partialorder %v506, 0.0
    %vm511 = vcmp.ge.f32.partialorder %v507, 0.0
    %v512 = vsel %vm508, 1, 0
    %v513 = vsel %vm509, 1, 0
    %v514 = vsel %vm510, 1, 0
    %v515 = vsel %vm511, 1, 0
    %v516 = vcvt.s32.f32 %v512
    %v517 = vcvt.s32.f32 %v513
    %v518 = vcvt.s32.f32 %v514
    %v519 = vcvt.s32.f32 %v515
    %v520 = vmul.u32 %v244, 2
    %v521 = vmul.u32 %v245, 2
    %v522 = vmul.u32 %v246, 2
    %v523 = vmul.u32 %v247, 2
    %v524 = vadd.s32 %v520, %v512
    %v525 = vadd.s32 %v521, %v513
    %v526 = vadd.s32 %v522, %v514
    %v527 = vadd.s32 %v523, %v515
    %v528 = vmul.f32 %v516, 2.0
    %v529 = vmul.f32 %v517, 2.0
    %v530 = vmul.f32 %v518, 2.0
    %v531 = vmul.f32 %v519, 2.0
    %v532 = vsub.f32 %v528, 1.0
    %v533 = vsub.f32 %v529, 1.0
    %v534 = vsub.f32 %v530, 1.0
    %v535 = vsub.f32 %v531, 1.0
    %v536 = vmul.f32 %v532, %v504
    %v537 = vmul.f32 %v533, %v505
    %v538 = vmul.f32 %v534, %v506
    %v539 = vmul.f32 %v535, %v507
    %v540 = vsub.f32 0.0, %v260
    %v541 = vsub.f32 0.0, %v261
    %v542 = vsub.f32 0.0, %v262
    %v543 = vsub.f32 0.0, %v263
    %v544 = vsub.f32 0.0, %v536
    %v545 = vsub.f32 0.0, %v537
    %v546 = vsub.f32 0.0, %v538
    %v547 = vsub.f32 0.0, %v539
    %v548 = vmax.f32 %v540, %v544
    %v549 = vmax.f32 %v541, %v545
    %v550 = vmax.f32 %v542, %v546
    %v551 = vmax.f32 %v543, %v547
    %v552 = vsub.f32 %v540, %v544
    %v553 = vsub.f32 %v541, %v545
    %v554 = vsub.f32 %v542, %v546
    %v555 = vsub.f32 %v543, %v547
    %v556 = vand.u32 2147483647, %v552
    %v557 = vand.u32 2147483647, %v553
    %v558 = vand.u32 2147483647, %v554
    %v559 = vand.u32 2147483647, %v555
    %v560 = vsub.f32 0.0, %v556
    %v561 = vsub.f32 0.0, %v557
    %v562 = vsub.f32 0.0, %v558
    %v563 = vsub.f32 0.0, %v559
    %v564 = vmul.f32 %v560, 1.442695
    %v565 = vpow.pop %v564
    %v566 = vmul.f32 %v561, 1.442695
    %v567 = vpow.pop %v566
    %v568 = vmul.f32 %v562, 1.442695
    %v569 = vpow.pop %v568
    %v570 = vmul.f32 %v563, 1.442695
    %v571 = vpow.pop %v570
    %v572 = vadd.f32 %v565, 1.0
    %v573 = vadd.f32 %v567, 1.0
    %v574 = vadd.f32 %v569, 1.0
    %v575 = vadd.f32 %v571, 1.0
    %v576 = vlog2.pop %v572
    %v577 = vmul.f32 %v576, 0.6931472
    %v578 = vlog2.pop %v573
    %v579 = vmul.f32 %v578, 0.6931472
    %v580 = vlog2.pop %v574
    %v581 = vmul.f32 %v580, 0.6931472
    %v582 = vlog2.pop %v575
    %v583 = vmul.f32 %v582, 0.6931472
    %v584 = vadd.f32 %v548, %v577
    %v585 = vadd.f32 %v549, %v579
    %v586 = vadd.f32 %v550, %v581
    %v587 = vadd.f32 %v551, %v583
    %v588 = vsub.f32 0.0, %v584
    %v589 = vsub.f32 0.0, %v585
    %v590 = vsub.f32 0.0, %v586
    %v591 = vsub.f32 0.0, %v587
    %vm592 = vcmp.eq.s32.totalorder %v524, 0
    %vm593 = vcmp.eq.s32.totalorder %v525, 0
    %vm594 = vcmp.eq.s32.totalorder %v526, 0
    %vm595 = vcmp.eq.s32.totalorder %v527, 0
    %v596 = vsel %vm592, 1, 0
    %v597 = vsel %vm593, 1, 0
    %v598 = vsel %vm594, 1, 0
    %v599 = vsel %vm595, 1, 0
    %vm600 = vcmp.eq.s32.totalorder %v596, 1
    %vm601 = vcmp.eq.s32.totalorder %v597, 1
    %vm602 = vcmp.eq.s32.totalorder %v598, 1
    %vm603 = vcmp.eq.s32.totalorder %v599, 1
    %v604 = vperm.slane %v18, 3
    %v605 = vperm.slane %v19, 3
    %v606 = vperm.slane %v20, 3
    %v607 = vperm.slane %v21, 3
    %v608 = vsel %vm600, %v604, 0.0
    %v609 = vsel %vm601, %v605, 0.0
    %v610 = vsel %vm602, %v606, 0.0
    %v611 = vsel %vm603, %v607, 0.0
    %vm612 = vcmp.eq.s32.totalorder %v524, 1
    %vm613 = vcmp.eq.s32.totalorder %v525, 1
    %vm614 = vcmp.eq.s32.totalorder %v526, 1
    %vm615 = vcmp.eq.s32.totalorder %v527, 1
    %v616 = vsel %vm612, 1, 0
    %v617 = vsel %vm613, 1, 0
    %v618 = vsel %vm614, 1, 0
    %v619 = vsel %vm615, 1, 0
    %vm620 = vcmp.eq.s32.totalorder %v616, 1
    %vm621 = vcmp.eq.s32.totalorder %v617, 1
    %vm622 = vcmp.eq.s32.totalorder %v618, 1
    %vm623 = vcmp.eq.s32.totalorder %v619, 1
    %v624 = vperm.slane %v18, 4
    %v625 = vperm.slane %v19, 4
    %v626 = vperm.slane %v20, 4
    %v627 = vperm.slane %v21, 4
    %v628 = vsel %vm620, %v624, %v608
    %v629 = vsel %vm621, %v625, %v609
    %v630 = vsel %vm622, %v626, %v610
    %v631 = vsel %vm623, %v627, %v611
    %vm632 = vcmp.eq.s32.totalorder %v524, 2
    %vm633 = vcmp.eq.s32.totalorder %v525, 2
    %vm634 = vcmp.eq.s32.totalorder %v526, 2
    %vm635 = vcmp.eq.s32.totalorder %v527, 2
    %v636 = vsel %vm632, 1, 0
    %v637 = vsel %vm633, 1, 0
    %v638 = vsel %vm634, 1, 0
    %v639 = vsel %vm635, 1, 0
    %vm640 = vcmp.eq.s32.totalorder %v636, 1
    %vm641 = vcmp.eq.s32.totalorder %v637, 1
    %vm642 = vcmp.eq.s32.totalorder %v638, 1
    %vm643 = vcmp.eq.s32.totalorder %v639, 1
    %v644 = vperm.slane %v18, 5
    %v645 = vperm.slane %v19, 5
    %v646 = vperm.slane %v20, 5
    %v647 = vperm.slane %v21, 5
    %v648 = vsel %vm640, %v644, %v628
    %v649 = vsel %vm641, %v645, %v629
    %v650 = vsel %vm642, %v646, %v630
    %v651 = vsel %vm643, %v647, %v631
    %vm652 = vcmp.eq.s32.totalorder %v524, 3
    %vm653 = vcmp.eq.s32.totalorder %v525, 3
    %vm654 = vcmp.eq.s32.totalorder %v526, 3
    %vm655 = vcmp.eq.s32.totalorder %v527, 3
    %v656 = vsel %vm652, 1, 0
    %v657 = vsel %vm653, 1, 0
    %v658 = vsel %vm654, 1, 0
    %v659 = vsel %vm655, 1, 0
    %vm660 = vcmp.eq.s32.totalorder %v656, 1
    %vm661 = vcmp.eq.s32.totalorder %v657, 1
    %vm662 = vcmp.eq.s32.totalorder %v658, 1
    %vm663 = vcmp.eq.s32.totalorder %v659, 1
    %v664 = vperm.slane %v18, 6
    %v665 = vperm.slane %v19, 6
    %v666 = vperm.slane %v20, 6
    %v667 = vperm.slane %v21, 6
    %v668 = vsel %vm660, %v664, %v648
    %v669 = vsel %vm661, %v665, %v649
    %v670 = vsel %vm662, %v666, %v650
    %v671 = vsel %vm663, %v667, %v651
    %v672 = vsub.f32 0.0, %v668
    %v673 = vsub.f32 0.0, %v669
    %v674 = vsub.f32 0.0, %v670
    %v675 = vsub.f32 0.0, %v671
    %v676 = vmax.f32 %v672, %v26
    %v677 = vmax.f32 %v673, %v26
    %v678 = vmax.f32 %v674, %v26
    %v679 = vmax.f32 %v675, %v26
    %v680 = vsub.f32 %v672, %v26
    %v681 = vsub.f32 %v673, %v26
    %v682 = vsub.f32 %v674, %v26
    %v683 = vsub.f32 %v675, %v26
    %v684 = vand.u32 2147483647, %v680
    %v685 = vand.u32 2147483647, %v681
    %v686 = vand.u32 2147483647, %v682
    %v687 = vand.u32 2147483647, %v683
    %v688 = vsub.f32 0.0, %v684
    %v689 = vsub.f32 0.0, %v685
    %v690 = vsub.f32 0.0, %v686
    %v691 = vsub.f32 0.0, %v687
    %v692 = vmul.f32 %v688, 1.442695
    %v693 = vpow.pop %v692
    %v694 = vmul.f32 %v689, 1.442695
    %v695 = vpow.pop %v694
    %v696 = vmul.f32 %v690, 1.442695
    %v697 = vpow.pop %v696
    %v698 = vmul.f32 %v691, 1.442695
    %v699 = vpow.pop %v698
    %v700 = vadd.f32 %v693, 1.0
    %v701 = vadd.f32 %v695, 1.0
    %v702 = vadd.f32 %v697, 1.0
    %v703 = vadd.f32 %v699, 1.0
    %v704 = vlog2.pop %v700
    %v705 = vmul.f32 %v704, 0.6931472
    %v706 = vlog2.pop %v701
    %v707 = vmul.f32 %v706, 0.6931472
    %v708 = vlog2.pop %v702
    %v709 = vmul.f32 %v708, 0.6931472
    %v710 = vlog2.pop %v703
    %v711 = vmul.f32 %v710, 0.6931472
    %v712 = vadd.f32 %v676, %v705
    %v713 = vadd.f32 %v677, %v707
    %v714 = vadd.f32 %v678, %v709
    %v715 = vadd.f32 %v679, %v711
    %v716 = vsub.f32 0.0, %v712
    %v717 = vsub.f32 0.0, %v713
    %v718 = vsub.f32 0.0, %v714
    %v719 = vsub.f32 0.0, %v715
    %v720 = vmax.f32 %v672, %v81
    %v721 = vmax.f32 %v673, %v81
    %v722 = vmax.f32 %v674, %v81
    %v723 = vmax.f32 %v675, %v81
    %v724 = vsub.f32 %v672, %v81
    %v725 = vsub.f32 %v673, %v81
    %v726 = vsub.f32 %v674, %v81
    %v727 = vsub.f32 %v675, %v81
    %v728 = vand.u32 2147483647, %v724
    %v729 = vand.u32 2147483647, %v725
    %v730 = vand.u32 2147483647, %v726
    %v731 = vand.u32 2147483647, %v727
    %v732 = vsub.f32 0.0, %v728
    %v733 = vsub.f32 0.0, %v729
    %v734 = vsub.f32 0.0, %v730
    %v735 = vsub.f32 0.0, %v731
    %v736 = vmul.f32 %v732, 1.442695
    %v737 = vpow.pop %v736
    %v738 = vmul.f32 %v733, 1.442695
    %v739 = vpow.pop %v738
    %v740 = vmul.f32 %v734, 1.442695
    %v741 = vpow.pop %v740
    %v742 = vmul.f32 %v735, 1.442695
    %v743 = vpow.pop %v742
    %v744 = vadd.f32 %v737, 1.0
    %v745 = vadd.f32 %v739, 1.0
    %v746 = vadd.f32 %v741, 1.0
    %v747 = vadd.f32 %v743, 1.0
    %v748 = vlog2.pop %v744
    %v749 = vmul.f32 %v748, 0.6931472
    %v750 = vlog2.pop %v745
    %v751 = vmul.f32 %v750, 0.6931472
    %v752 = vlog2.pop %v746
    %v753 = vmul.f32 %v752, 0.6931472
    %v754 = vlog2.pop %v747
    %v755 = vmul.f32 %v754, 0.6931472
    %v756 = vadd.f32 %v720, %v749
    %v757 = vadd.f32 %v721, %v751
    %v758 = vadd.f32 %v722, %v753
    %v759 = vadd.f32 %v723, %v755
    %v760 = vsub.f32 0.0, %v756
    %v761 = vsub.f32 0.0, %v757
    %v762 = vsub.f32 0.0, %v758
    %v763 = vsub.f32 0.0, %v759
    %768 = vrot.lane.b32.xlu0 %v760, 96
    %v769 = vpop.permute.xlu0 %768
    %770 = vrot.lane.b32.xlu0 %v761, 96
    %v771 = vpop.permute.xlu0 %770
    %772 = vrot.lane.b32.xlu0 %v762, 96
    %v773 = vpop.permute.xlu0 %772
    %774 = vrot.lane.b32.xlu0 %v763, 96
    %v775 = vpop.permute.xlu0 %774
    %v780 = vmax.f32 %v716, %v769
    %v781 = vmax.f32 %v717, %v771
    %v782 = vmax.f32 %v718, %v773
    %v783 = vmax.f32 %v719, %v775
    %v784 = vsub.f32 %v716, %v769
    %v785 = vsub.f32 %v717, %v771
    %v786 = vsub.f32 %v718, %v773
    %v787 = vsub.f32 %v719, %v775
    %v788 = vand.u32 2147483647, %v784
    %v789 = vand.u32 2147483647, %v785
    %v790 = vand.u32 2147483647, %v786
    %v791 = vand.u32 2147483647, %v787
    %v792 = vsub.f32 0.0, %v788
    %v793 = vsub.f32 0.0, %v789
    %v794 = vsub.f32 0.0, %v790
    %v795 = vsub.f32 0.0, %v791
    %v796 = vmul.f32 %v792, 1.442695
    %v797 = vpow.pop %v796
    %v798 = vmul.f32 %v793, 1.442695
    %v799 = vpow.pop %v798
    %v800 = vmul.f32 %v794, 1.442695
    %v801 = vpow.pop %v800
    %v802 = vmul.f32 %v795, 1.442695
    %v803 = vpow.pop %v802
    %v804 = vadd.f32 %v797, 1.0
    %v805 = vadd.f32 %v799, 1.0
    %v806 = vadd.f32 %v801, 1.0
    %v807 = vadd.f32 %v803, 1.0
    %v808 = vlog2.pop %v804
    %v809 = vmul.f32 %v808, 0.6931472
    %v810 = vlog2.pop %v805
    %v811 = vmul.f32 %v810, 0.6931472
    %v812 = vlog2.pop %v806
    %v813 = vmul.f32 %v812, 0.6931472
    %v814 = vlog2.pop %v807
    %v815 = vmul.f32 %v814, 0.6931472
    %v816 = vadd.f32 %v780, %v809
    %v817 = vadd.f32 %v781, %v811
    %v818 = vadd.f32 %v782, %v813
    %v819 = vadd.f32 %v783, %v815
    %v820 = vsub.f32 0.0, %v816
    %v821 = vsub.f32 0.0, %v817
    %v822 = vsub.f32 0.0, %v818
    %v823 = vsub.f32 0.0, %v819
    %v824 = vsel %vm187, %v820, -inf
    %825 = vmax.xlane.f32.xlu0 %v824
    %v826 = vpop.xlane.xlu0 %825
    %v827 = vsel %vm187, %v821, -inf
    %828 = vmax.xlane.f32.xlu0 %v827
    %v829 = vpop.xlane.xlu0 %828
    %v830 = vsel %vm187, %v822, -inf
    %831 = vmax.xlane.f32.xlu0 %v830
    %v832 = vpop.xlane.xlu0 %831
    %v833 = vsel %vm187, %v823, -inf
    %834 = vmax.xlane.f32.xlu0 %v833
    %v835 = vpop.xlane.xlu0 %834
    %v836 = vsub.f32 %v820, %v826
    %v837 = vsub.f32 %v821, %v829
    %v838 = vsub.f32 %v822, %v832
    %v839 = vsub.f32 %v823, %v835
    %v840 = vmul.f32 %v836, 1.442695
    %v841 = vpow.pop %v840
    %v842 = vmul.f32 %v837, 1.442695
    %v843 = vpow.pop %v842
    %v844 = vmul.f32 %v838, 1.442695
    %v845 = vpow.pop %v844
    %v846 = vmul.f32 %v839, 1.442695
    %v847 = vpow.pop %v846
    %v848 = vsel %vm187, %v841, 0.0
    %849 = vadd.xlane.f32.xlu0 %v848
    %v850 = vpop.xlane.xlu0 %849
    %v851 = vsel %vm187, %v843, 0.0
    %852 = vadd.xlane.f32.xlu0 %v851
    %v853 = vpop.xlane.xlu0 %852
    %v854 = vsel %vm187, %v845, 0.0
    %855 = vadd.xlane.f32.xlu0 %v854
    %v856 = vpop.xlane.xlu0 %855
    %v857 = vsel %vm187, %v847, 0.0
    %858 = vadd.xlane.f32.xlu0 %v857
    %v859 = vpop.xlane.xlu0 %858
    %v860 = vlog2.pop %v850
    %v861 = vmul.f32 %v860, 0.6931472
    %v862 = vlog2.pop %v853
    %v863 = vmul.f32 %v862, 0.6931472
    %v864 = vlog2.pop %v856
    %v865 = vmul.f32 %v864, 0.6931472
    %v866 = vlog2.pop %v859
    %v867 = vmul.f32 %v866, 0.6931472
    %v868 = vadd.f32 %v826, %v861
    %v869 = vadd.f32 %v829, %v863
    %v870 = vadd.f32 %v832, %v865
    %v871 = vadd.f32 %v835, %v867
    %v872 = vsub.f32 0.0, %v868
    %v873 = vsub.f32 0.0, %v869
    %v874 = vsub.f32 0.0, %v870
    %v875 = vsub.f32 0.0, %v871
    %vm876 = vcmp.ge.f32.partialorder %v872, 0.0
    %vm877 = vcmp.ge.f32.partialorder %v873, 0.0
    %vm878 = vcmp.ge.f32.partialorder %v874, 0.0
    %vm879 = vcmp.ge.f32.partialorder %v875, 0.0
    %v880 = vsel %vm876, 1, 0
    %v881 = vsel %vm877, 1, 0
    %v882 = vsel %vm878, 1, 0
    %v883 = vsel %vm879, 1, 0
    %v884 = vcvt.s32.f32 %v880
    %v885 = vcvt.s32.f32 %v881
    %v886 = vcvt.s32.f32 %v882
    %v887 = vcvt.s32.f32 %v883
    %v888 = vmul.u32 %v524, 2
    %v889 = vmul.u32 %v525, 2
    %v890 = vmul.u32 %v526, 2
    %v891 = vmul.u32 %v527, 2
    %v892 = vadd.s32 %v888, %v880
    %v893 = vadd.s32 %v889, %v881
    %v894 = vadd.s32 %v890, %v882
    %v895 = vadd.s32 %v891, %v883
    %v896 = vmul.f32 %v884, 2.0
    %v897 = vmul.f32 %v885, 2.0
    %v898 = vmul.f32 %v886, 2.0
    %v899 = vmul.f32 %v887, 2.0
    %v900 = vsub.f32 %v896, 1.0
    %v901 = vsub.f32 %v897, 1.0
    %v902 = vsub.f32 %v898, 1.0
    %v903 = vsub.f32 %v899, 1.0
    %v904 = vmul.f32 %v900, %v872
    %v905 = vmul.f32 %v901, %v873
    %v906 = vmul.f32 %v902, %v874
    %v907 = vmul.f32 %v903, %v875
    %v908 = vsub.f32 0.0, %v588
    %v909 = vsub.f32 0.0, %v589
    %v910 = vsub.f32 0.0, %v590
    %v911 = vsub.f32 0.0, %v591
    %v912 = vsub.f32 0.0, %v904
    %v913 = vsub.f32 0.0, %v905
    %v914 = vsub.f32 0.0, %v906
    %v915 = vsub.f32 0.0, %v907
    %v916 = vmax.f32 %v908, %v912
    %v917 = vmax.f32 %v909, %v913
    %v918 = vmax.f32 %v910, %v914
    %v919 = vmax.f32 %v911, %v915
    %v920 = vsub.f32 %v908, %v912
    %v921 = vsub.f32 %v909, %v913
    %v922 = vsub.f32 %v910, %v914
    %v923 = vsub.f32 %v911, %v915
    %v924 = vand.u32 2147483647, %v920
    %v925 = vand.u32 2147483647, %v921
    %v926 = vand.u32 2147483647, %v922
    %v927 = vand.u32 2147483647, %v923
    %v928 = vsub.f32 0.0, %v924
    %v929 = vsub.f32 0.0, %v925
    %v930 = vsub.f32 0.0, %v926
    %v931 = vsub.f32 0.0, %v927
    %v932 = vmul.f32 %v928, 1.442695
    %v933 = vpow.pop %v932
    %v934 = vmul.f32 %v929, 1.442695
    %v935 = vpow.pop %v934
    %v936 = vmul.f32 %v930, 1.442695
    %v937 = vpow.pop %v936
    %v938 = vmul.f32 %v931, 1.442695
    %v939 = vpow.pop %v938
    %v940 = vadd.f32 %v933, 1.0
    %v941 = vadd.f32 %v935, 1.0
    %v942 = vadd.f32 %v937, 1.0
    %v943 = vadd.f32 %v939, 1.0
    %v944 = vlog2.pop %v940
    %v945 = vmul.f32 %v944, 0.6931472
    %v946 = vlog2.pop %v941
    %v947 = vmul.f32 %v946, 0.6931472
    %v948 = vlog2.pop %v942
    %v949 = vmul.f32 %v948, 0.6931472
    %v950 = vlog2.pop %v943
    %v951 = vmul.f32 %v950, 0.6931472
    %v952 = vadd.f32 %v916, %v945
    %v953 = vadd.f32 %v917, %v947
    %v954 = vadd.f32 %v918, %v949
    %v955 = vadd.f32 %v919, %v951
    %v956 = vsub.f32 0.0, %v952
    %v957 = vsub.f32 0.0, %v953
    %v958 = vsub.f32 0.0, %v954
    %v959 = vsub.f32 0.0, %v955
    %v960 = vsub.f32 0.0, %v956
    %v961 = vsub.f32 0.0, %v957
    %v962 = vsub.f32 0.0, %v958
    %v963 = vsub.f32 0.0, %v959
    %v964 = vmax.f32 %v960, %v961
    %v965 = vsub.f32 %v960, %v961
    %v966 = vand.u32 2147483647, %v965
    %v967 = vsub.f32 0.0, %v966
    %v968 = vmul.f32 %v967, 1.442695
    %v969 = vpow.pop %v968
    %v970 = vadd.f32 %v969, 1.0
    %v971 = vlog2.pop %v970
    %v972 = vmul.f32 %v971, 0.6931472
    %v973 = vadd.f32 %v964, %v972
    %v974 = vmax.f32 %v973, %v962
    %v975 = vsub.f32 %v973, %v962
    %v976 = vand.u32 2147483647, %v975
    %v977 = vsub.f32 0.0, %v976
    %v978 = vmul.f32 %v977, 1.442695
    %v979 = vpow.pop %v978
    %v980 = vadd.f32 %v979, 1.0
    %v981 = vlog2.pop %v980
    %v982 = vmul.f32 %v981, 0.6931472
    %v983 = vadd.f32 %v974, %v982
    %v984 = vmax.f32 %v983, %v963
    %v985 = vsub.f32 %v983, %v963
    %v986 = vand.u32 2147483647, %v985
    %v987 = vsub.f32 0.0, %v986
    %v988 = vmul.f32 %v987, 1.442695
    %v989 = vpow.pop %v988
    %v990 = vadd.f32 %v989, 1.0
    %v991 = vlog2.pop %v990
    %v992 = vmul.f32 %v991, 0.6931472
    %v993 = vadd.f32 %v984, %v992
    %v994 = vsub.f32 0.0, %v993
    %vm995 = vcmask 7168
    %996 = vst.msk [vmem:[%s3] sm:$0xff] %vm995, %v994
    %vm997 = vcmp.eq.s32.totalorder %v892, 0
    %vm998 = vcmp.eq.s32.totalorder %v893, 0
    %vm999 = vcmp.eq.s32.totalorder %v894, 0
    %vm1000 = vcmp.eq.s32.totalorder %v895, 0
    %v1001 = vsel %vm997, 1, 0
    %v1002 = vsel %vm998, 1, 0
    %v1003 = vsel %vm999, 1, 0
    %v1004 = vsel %vm1000, 1, 0
    %vm1005 = vcmp.eq.s32.totalorder %v1001, 1
    %vm1006 = vcmp.eq.s32.totalorder %v1002, 1
    %vm1007 = vcmp.eq.s32.totalorder %v1003, 1
    %vm1008 = vcmp.eq.s32.totalorder %v1004, 1
    %v1009 = vperm.slane %v22, 0
    %v1010 = vperm.slane %v23, 0
    %v1011 = vperm.slane %v24, 0
    %v1012 = vperm.slane %v25, 0
    %v1013 = vsel %vm1005, %v1009, 0.0
    %v1014 = vsel %vm1006, %v1010, 0.0
    %v1015 = vsel %vm1007, %v1011, 0.0
    %v1016 = vsel %vm1008, %v1012, 0.0
    %vm1017 = vcmp.eq.s32.totalorder %v892, 1
    %vm1018 = vcmp.eq.s32.totalorder %v893, 1
    %vm1019 = vcmp.eq.s32.totalorder %v894, 1
    %vm1020 = vcmp.eq.s32.totalorder %v895, 1
    %v1021 = vsel %vm1017, 1, 0
    %v1022 = vsel %vm1018, 1, 0
    %v1023 = vsel %vm1019, 1, 0
    %v1024 = vsel %vm1020, 1, 0
    %vm1025 = vcmp.eq.s32.totalorder %v1021, 1
    %vm1026 = vcmp.eq.s32.totalorder %v1022, 1
    %vm1027 = vcmp.eq.s32.totalorder %v1023, 1
    %vm1028 = vcmp.eq.s32.totalorder %v1024, 1
    %v1029 = vperm.slane %v22, 1
    %v1030 = vperm.slane %v23, 1
    %v1031 = vperm.slane %v24, 1
    %v1032 = vperm.slane %v25, 1
    %v1033 = vsel %vm1025, %v1029, %v1013
    %v1034 = vsel %vm1026, %v1030, %v1014
    %v1035 = vsel %vm1027, %v1031, %v1015
    %v1036 = vsel %vm1028, %v1032, %v1016
    %vm1037 = vcmp.eq.s32.totalorder %v892, 2
    %vm1038 = vcmp.eq.s32.totalorder %v893, 2
    %vm1039 = vcmp.eq.s32.totalorder %v894, 2
    %vm1040 = vcmp.eq.s32.totalorder %v895, 2
    %v1041 = vsel %vm1037, 1, 0
    %v1042 = vsel %vm1038, 1, 0
    %v1043 = vsel %vm1039, 1, 0
    %v1044 = vsel %vm1040, 1, 0
    %vm1045 = vcmp.eq.s32.totalorder %v1041, 1
    %vm1046 = vcmp.eq.s32.totalorder %v1042, 1
    %vm1047 = vcmp.eq.s32.totalorder %v1043, 1
    %vm1048 = vcmp.eq.s32.totalorder %v1044, 1
    %v1049 = vperm.slane %v22, 2
    %v1050 = vperm.slane %v23, 2
    %v1051 = vperm.slane %v24, 2
    %v1052 = vperm.slane %v25, 2
    %v1053 = vsel %vm1045, %v1049, %v1033
    %v1054 = vsel %vm1046, %v1050, %v1034
    %v1055 = vsel %vm1047, %v1051, %v1035
    %v1056 = vsel %vm1048, %v1052, %v1036
    %vm1057 = vcmp.eq.s32.totalorder %v892, 3
    %vm1058 = vcmp.eq.s32.totalorder %v893, 3
    %vm1059 = vcmp.eq.s32.totalorder %v894, 3
    %vm1060 = vcmp.eq.s32.totalorder %v895, 3
    %v1061 = vsel %vm1057, 1, 0
    %v1062 = vsel %vm1058, 1, 0
    %v1063 = vsel %vm1059, 1, 0
    %v1064 = vsel %vm1060, 1, 0
    %vm1065 = vcmp.eq.s32.totalorder %v1061, 1
    %vm1066 = vcmp.eq.s32.totalorder %v1062, 1
    %vm1067 = vcmp.eq.s32.totalorder %v1063, 1
    %vm1068 = vcmp.eq.s32.totalorder %v1064, 1
    %v1069 = vperm.slane %v22, 3
    %v1070 = vperm.slane %v23, 3
    %v1071 = vperm.slane %v24, 3
    %v1072 = vperm.slane %v25, 3
    %v1073 = vsel %vm1065, %v1069, %v1053
    %v1074 = vsel %vm1066, %v1070, %v1054
    %v1075 = vsel %vm1067, %v1071, %v1055
    %v1076 = vsel %vm1068, %v1072, %v1056
    %vm1077 = vcmp.eq.s32.totalorder %v892, 4
    %vm1078 = vcmp.eq.s32.totalorder %v893, 4
    %vm1079 = vcmp.eq.s32.totalorder %v894, 4
    %vm1080 = vcmp.eq.s32.totalorder %v895, 4
    %v1081 = vsel %vm1077, 1, 0
    %v1082 = vsel %vm1078, 1, 0
    %v1083 = vsel %vm1079, 1, 0
    %v1084 = vsel %vm1080, 1, 0
    %vm1085 = vcmp.eq.s32.totalorder %v1081, 1
    %vm1086 = vcmp.eq.s32.totalorder %v1082, 1
    %vm1087 = vcmp.eq.s32.totalorder %v1083, 1
    %vm1088 = vcmp.eq.s32.totalorder %v1084, 1
    %v1089 = vperm.slane %v22, 4
    %v1090 = vperm.slane %v23, 4
    %v1091 = vperm.slane %v24, 4
    %v1092 = vperm.slane %v25, 4
    %v1093 = vsel %vm1085, %v1089, %v1073
    %v1094 = vsel %vm1086, %v1090, %v1074
    %v1095 = vsel %vm1087, %v1091, %v1075
    %v1096 = vsel %vm1088, %v1092, %v1076
    %vm1097 = vcmp.eq.s32.totalorder %v892, 5
    %vm1098 = vcmp.eq.s32.totalorder %v893, 5
    %vm1099 = vcmp.eq.s32.totalorder %v894, 5
    %vm1100 = vcmp.eq.s32.totalorder %v895, 5
    %v1101 = vsel %vm1097, 1, 0
    %v1102 = vsel %vm1098, 1, 0
    %v1103 = vsel %vm1099, 1, 0
    %v1104 = vsel %vm1100, 1, 0
    %vm1105 = vcmp.eq.s32.totalorder %v1101, 1
    %vm1106 = vcmp.eq.s32.totalorder %v1102, 1
    %vm1107 = vcmp.eq.s32.totalorder %v1103, 1
    %vm1108 = vcmp.eq.s32.totalorder %v1104, 1
    %v1109 = vperm.slane %v22, 5
    %v1110 = vperm.slane %v23, 5
    %v1111 = vperm.slane %v24, 5
    %v1112 = vperm.slane %v25, 5
    %v1113 = vsel %vm1105, %v1109, %v1093
    %v1114 = vsel %vm1106, %v1110, %v1094
    %v1115 = vsel %vm1107, %v1111, %v1095
    %v1116 = vsel %vm1108, %v1112, %v1096
    %vm1117 = vcmp.eq.s32.totalorder %v892, 6
    %vm1118 = vcmp.eq.s32.totalorder %v893, 6
    %vm1119 = vcmp.eq.s32.totalorder %v894, 6
    %vm1120 = vcmp.eq.s32.totalorder %v895, 6
    %v1121 = vsel %vm1117, 1, 0
    %v1122 = vsel %vm1118, 1, 0
    %v1123 = vsel %vm1119, 1, 0
    %v1124 = vsel %vm1120, 1, 0
    %vm1125 = vcmp.eq.s32.totalorder %v1121, 1
    %vm1126 = vcmp.eq.s32.totalorder %v1122, 1
    %vm1127 = vcmp.eq.s32.totalorder %v1123, 1
    %vm1128 = vcmp.eq.s32.totalorder %v1124, 1
    %v1129 = vperm.slane %v22, 6
    %v1130 = vperm.slane %v23, 6
    %v1131 = vperm.slane %v24, 6
    %v1132 = vperm.slane %v25, 6
    %v1133 = vsel %vm1125, %v1129, %v1113
    %v1134 = vsel %vm1126, %v1130, %v1114
    %v1135 = vsel %vm1127, %v1131, %v1115
    %v1136 = vsel %vm1128, %v1132, %v1116
    %vm1137 = vcmp.eq.s32.totalorder %v892, 7
    %vm1138 = vcmp.eq.s32.totalorder %v893, 7
    %vm1139 = vcmp.eq.s32.totalorder %v894, 7
    %vm1140 = vcmp.eq.s32.totalorder %v895, 7
    %v1141 = vsel %vm1137, 1, 0
    %v1142 = vsel %vm1138, 1, 0
    %v1143 = vsel %vm1139, 1, 0
    %v1144 = vsel %vm1140, 1, 0
    %vm1145 = vcmp.eq.s32.totalorder %v1141, 1
    %vm1146 = vcmp.eq.s32.totalorder %v1142, 1
    %vm1147 = vcmp.eq.s32.totalorder %v1143, 1
    %vm1148 = vcmp.eq.s32.totalorder %v1144, 1
    %v1149 = vperm.slane %v22, 7
    %v1150 = vperm.slane %v23, 7
    %v1151 = vperm.slane %v24, 7
    %v1152 = vperm.slane %v25, 7
    %v1153 = vsel %vm1145, %v1149, %v1133
    %v1154 = vsel %vm1146, %v1150, %v1134
    %v1155 = vsel %vm1147, %v1151, %v1135
    %v1156 = vsel %vm1148, %v1152, %v1136
    %vm1157 = vcmask 130048
    %1158 = vst.msk [vmem:[#allocation2] sm:$0xff] %vm1157, %v1153
    %1160 = vrot.lane.b32.xlu0 %v1154, 16
    %v1161 = vpop.permute.xlu0 %1160
    %vm1163 = vcmask 261248
    %1164 = vst.msk [vmem:[#allocation2] sm:$0xff] %vm1163, %v1161
    %1166 = vrot.lane.b32.xlu0 %v1155, 32
    %v1167 = vpop.permute.xlu0 %1166
    %vm1169 = vcmask 392448
    %1170 = vst.msk [vmem:[#allocation2] sm:$0xff] %vm1169, %v1167
    %1172 = vrot.lane.b32.xlu0 %v1156, 48
    %v1173 = vpop.permute.xlu0 %1172
    %vm1175 = vcmask 523648
    %1176 = vst.msk [vmem:[#allocation2] sm:$0xff] %vm1175, %v1173
    // Predicated region
    $region14: #{tpu_custom_call.1} parent=1 // pred_check
      _
    $region15: #{tpu_custom_call.1} parent=1 // pred_check_branch
      %1178 = sbr.rel (0) target = $region17
    $region16: #{tpu_custom_call.1} parent=1 // pred_region
      _
    $region17: #{tpu_custom_call.1} parent=1 // pred_fallthru
      _
    // Predicated region
    $region18: #{tpu_custom_call.1} parent=1 // pred_check
      _
    $region19: #{tpu_custom_call.1} parent=1 // pred_check_branch
      %1180 = sbr.rel (0) target = $region21
    $region20: #{tpu_custom_call.1} parent=1 // pred_region
      %1182 = vsyncadd [#allocation3], 0
      %s1184 = sshll.u32 [#allocation2], 4
      %s1185 = int_to_ptr.vmem [resolvable:$true] %s1184
      %s1186 = sshll.u32 %s4, 4
      %s1187 = int_to_ptr.hbm [resolvable:$true] %s1186
      %1189 = dma.vmem_to_hbm [thread:$0]  %s1185, 128, %s1187, [#allocation3]
    $region21: #{tpu_custom_call.1} parent=1 // pred_fallthru
      _
    // Predicated region
    $region22: #{tpu_custom_call.1} parent=1 // pred_check
      _
    $region23: #{tpu_custom_call.1} parent=1 // pred_check_branch
      %1191 = sbr.rel (0) target = $region25
    $region24: #{tpu_custom_call.1} parent=1 // pred_region
      _
    $region25: #{tpu_custom_call.1} parent=1 // pred_fallthru
      _
    // Predicated region
    $region26: #{tpu_custom_call.1} parent=1 // pred_check
      _
    $region27: #{tpu_custom_call.1} parent=1 // pred_check_branch
      %1193 = sbr.rel (0) target = $region29
    $region28: #{tpu_custom_call.1} parent=1 // pred_region
      %1195 = dma.done [#allocation3], 128
    $region29: #{tpu_custom_call.1} parent=1 // pred_fallthru
      _
    %1196 = vsyncpa [#allocation3], 1

</llo_original>
